<compile_context>
chip_gen: v7x
topology: tpu7x:2x2x1
jax: 0.10.0
libtpu: 0.0.40
codegen_flags: <defaults>
</compile_context>

<pallas_src>
import jax
import jax.numpy as jnp
from jax.experimental import pallas as pl
from jax.experimental.pallas import tpu as pltpu


def decoder_kernel(cwb_ref, g_ref, w1g_ref, w2_ref, w13_ref, v2_ref, v3_ref,
                   bias_ref, out_ref):
    mm = w2_ref.dtype                      # MXU operand dtype (bf16 fast path or f32)
    ew = cwb_ref.dtype                     # elementwise dtype (bf16 on v6e/v7x, f32 on v5e)

    cwb1 = cwb_ref[0, :, 0:1]              # (256, 1) codeword part of mlp1 layer 1 (+ b1)
    cwb2 = cwb_ref[0, :, 1:2]              # (256, 1) codeword part of mlp2 layer 1 (+ c1 + B1f@b3)
    g = g_ref[...]                         # (2, tm)  channel-first grid tile
    gx, gy = g[0:1, :], g[1:2, :]
    b2 = bias_ref[:, 0:1]                  # (64, 1)
    c2 = bias_ref[:, 1:2]                  # (64, 1)
    c3 = bias_ref[0:3, 2:3]                # (3, 1)

    # mlp1 layer 1: K=2 grid projection stays on the VPU (two broadcast FMAs) + ReLU.
    h1 = jnp.maximum(cwb1 + w1g_ref[:, 0:1] * gx + w1g_ref[:, 1:2] * gy, 0.0)      # (256, tm) ew
    # mlp1 layer 2 (MXU, f32 accumulation).
    h2 = jnp.maximum(
        jnp.dot(w2_ref[...], h1.astype(mm), preferred_element_type=jnp.float32) + b2,
        0.0)                                                                        # (64, tm) f32
    # mlp2 layer 1 with fold1 eliminated (W13 = B1f @ A3; its bias folded into cwb2).
    s = jnp.dot(w13_ref[...], h2.astype(mm), preferred_element_type=jnp.float32)
    g1 = jnp.maximum(cwb2 + s.astype(ew), 0.0)                                      # (256, tm) ew
    # mlp2 layer 2.
    g2 = jnp.maximum(
        jnp.dot(v2_ref[...], g1.astype(mm), preferred_element_type=jnp.float32) + c2,
        0.0)                                                                        # (64, tm) f32
    # mlp2 layer 3 -> lane-dense channel-first (3, tm) output block, unmasked store.
    out = jnp.dot(v3_ref[...], g2.astype(mm), preferred_element_type=jnp.float32) + c3
    out_ref[0, :, :] = out.astype(out_ref.dtype)


def _round_up(x, k):
    return (x + k - 1) // k * k


def _full_spec(shape):
    nd = len(shape)
    return pl.BlockSpec(shape, lambda b, j, nd=nd: (0,) * nd)


def _default_elem_bf16():
    """bf16 VALU exists on v6e and later; v5e and older lack it -> keep f32 elementwise."""
    try:
        kind = jax.devices()[0].device_kind.lower()
    except Exception:
        return False
    return not any(t in kind for t in ("v2", "v3", "v4", "v5"))


def folding_decoder(codeword, grid_pts, params, *, tm=2048, use_bf16=True, elem_bf16=None):
    """codeword: (B, 512) f32, grid_pts: (m, 2) f32 -> (B, m, 3) f32."""
    B, C = codeword.shape
    m = int(grid_pts.shape[0])

    mm_dtype = jnp.bfloat16 if use_bf16 else jnp.float32
    if elem_bf16 is None:
        elem_bf16 = use_bf16 and _default_elem_bf16()
    elem_dtype = jnp.bfloat16 if (use_bf16 and elem_bf16) else jnp.float32

    A1, b1 = params["A1"], params["b1"]          # (256, C+2), (256,)
    A2, b2 = params["A2"], params["b2"]          # (64, 256), (64,)
    A3, b3 = params["A3"], params["b3"]          # (3, 64), (3,)
    B1, c1 = params["B1"], params["c1"]          # (256, C+3), (256,)
    B2, c2 = params["B2"], params["c2"]          # (64, 256), (64,)
    B3, c3 = params["B3"], params["c3"]          # (3, 64), (3,)
    H1 = A1.shape[0]                             # 256
    H2 = A2.shape[0]                             # 64

    # --- codeword projections hoisted out of the point loop (fused by jit) ----------------
    # fold1 elimination is valid ONLY because mlp1 has no activation after its last conv:
    #   B1f @ (A3 @ h + b3) == (B1f @ A3) @ h + B1f @ b3
    A1c, A1g = A1[:, :C], A1[:, C:]              # (256, 512), (256, 2)
    B1c, B1f = B1[:, :C], B1[:, C:]              # (256, 512), (256, 3)
    W13 = (B1f @ A3)                             # (256, 64), composed in f32
    cwb1 = codeword @ A1c.T + b1                 # (B, 256)
    cwb2 = codeword @ B1c.T + c1 + B1f @ b3      # (B, 256)
    cwb = jnp.stack([cwb1, cwb2], axis=-1).astype(elem_dtype)        # (B, 256, 2) packed

    # --- tiling: single (or two) big lane-dense point tile(s) ------------------------------
    m128 = _round_up(m, 128)
    tm_eff = max(128, _round_up(min(tm, m128), 128))
    if B == 1 and m128 >= 256:
        # keep nt >= 2 so both v7x TensorCores get work under ("parallel", "parallel")
        tm_eff = min(tm_eff, _round_up(pl.cdiv(m128, 2), 128))
    mp = _round_up(m, tm_eff)
    nt = mp // tm_eff

    grid_cf = jnp.pad(grid_pts.T, ((0, 0), (0, mp - m))).astype(elem_dtype)   # (2, mp)

    # packed small biases: col0 = b2, col1 = c2, col2[:3] = c3 (zero-padded)
    bias = jnp.stack([b2, c2, jnp.pad(c3, (0, H2 - c3.shape[0]))],
                     axis=1).astype(jnp.float32)                              # (64, 3)

    weight_args = (
        A1g.astype(elem_dtype),                  # (256, 2)  grid projection (VPU path)
        A2.astype(mm_dtype),                     # (64, 256)
        W13.astype(mm_dtype),                    # (256, 64)
        B2.astype(mm_dtype),                     # (64, 256)
        B3.astype(mm_dtype),                     # (3, 64)
        bias,                                    # (64, 3)
    )

    in_specs = [
        pl.BlockSpec((1, H1, 2), lambda b, j: (b, 0, 0)),        # packed cwb (per batch)
        pl.BlockSpec((2, tm_eff), lambda b, j: (0, j)),          # grid tile (shared across b)
    ] + [_full_spec(w.shape) for w in weight_args]

    out_cf = pl.pallas_call(
        decoder_kernel,
        out_shape=jax.ShapeDtypeStruct((B, 3, mp), jnp.float32),
        grid_spec=pltpu.PrefetchScalarGridSpec(
            num_scalar_prefetch=0,
            grid=(B, nt),
            in_specs=in_specs,
            out_specs=pl.BlockSpec((1, 3, tm_eff), lambda b, j: (b, 0, j)),
        ),
        compiler_params=pltpu.CompilerParams(
            dimension_semantics=("parallel", "parallel")),
    )(cwb, grid_cf, *weight_args)

    # channel-first -> (B, m, 3) (matches torch output layout); fused with the
    # pallas_call epilogue under jit.
    return jnp.transpose(out_cf[:, :, :m], (0, 2, 1))


folding_decoder_jit = jax.jit(
    folding_decoder, static_argnames=("tm", "use_bf16", "elem_bf16"))


def init_params(key, codeword_dim=512):
    """Deterministic synthetic weights in torch layout: Conv1d weight (C_out, C_in)."""
    ks = jax.random.split(key, 12)
    s = 0.05

    def w(k, shape):
        return (s * jax.random.normal(k, shape)).astype(jnp.float32)

    return dict(
        A1=w(ks[0], (256, codeword_dim + 2)), b1=w(ks[1], (256,)),
        A2=w(ks[2], (64, 256)), b2=w(ks[3], (64,)),
        A3=w(ks[4], (3, 64)), b3=w(ks[5], (3,)),
        B1=w(ks[6], (256, codeword_dim + 3)), c1=w(ks[7], (256,)),
        B2=w(ks[8], (64, 256)), c2=w(ks[9], (64,)),
        B3=w(ks[10], (3, 64)), c3=w(ks[11], (3,)),
    )


def build_grid(grid_side):
    # Mirrors Decoder.build_grid: itertools.product(x, y) -> x varies slowest.
    xs = jnp.linspace(-0.3, 0.3, grid_side).astype(jnp.float32)
    ys = jnp.linspace(-0.3, 0.3, grid_side).astype(jnp.float32)
    return jnp.stack([jnp.repeat(xs, grid_side), jnp.tile(ys, grid_side)], axis=1)  # (m, 2)


def reference(codeword, grid_pts, p):
    """Pure-JAX reference reproducing the torch forward pass exactly."""
    B, C = codeword.shape
    m = grid_pts.shape[0]
    x = jnp.broadcast_to(codeword[:, :, None], (B, C, m))     # input.transpose(1,2).repeat(1,1,m)
    g = jnp.broadcast_to(grid_pts.T[None], (B, 2, m))

    def conv(w, b, t):
        return jnp.einsum("oi,bim->bom", w, t) + b[None, :, None]

    h = jax.nn.relu(conv(p["A1"], p["b1"], jnp.concatenate([x, g], axis=1)))
    h = jax.nn.relu(conv(p["A2"], p["b2"], h))
    f1 = conv(p["A3"], p["b3"], h)
    h2 = jax.nn.relu(conv(p["B1"], p["c1"], jnp.concatenate([x, f1], axis=1)))
    h2 = jax.nn.relu(conv(p["B2"], p["c2"], h2))
    f2 = conv(p["B3"], p["c3"], h2)
    return jnp.transpose(f2, (0, 2, 1))                        # (B, m, 3)


if __name__ == "__main__":
    key = jax.random.PRNGKey(0)
    k_x, k_p = jax.random.split(key)

    B = 2
    codeword_dim = 512                 # fixed by the module (514 = 512 + 2, 515 = 512 + 3)
    grid_side = 16                     # small stand-in for the default 45
    m = grid_side * grid_side          # 256 points

    # torch forward takes `input` of shape (B, 1, 512)
    x = jax.random.normal(k_x, (B, 1, codeword_dim), dtype=jnp.float32)
    codeword = x[:, 0, :]
    grid_pts = build_grid(grid_side)
    params = init_params(k_p, codeword_dim)

    ref = reference(codeword, grid_pts, params)

    # Default fast path: bf16 MXU operands (+ bf16 elementwise on v6e/v7x), f32 accumulation.
    out = jax.block_until_ready(folding_decoder_jit(codeword, grid_pts, params))
    assert out.shape == (B, m, 3), out.shape
    assert jnp.allclose(out, ref, rtol=5e-2, atol=5e-2), float(jnp.max(jnp.abs(out - ref)))

    # Full-precision path: tight tolerance against the reference.
    out_f32 = jax.block_until_ready(
        folding_decoder_jit(codeword, grid_pts, params, use_bf16=False))
    assert jnp.allclose(out_f32, ref, rtol=1e-4, atol=1e-4), \
        float(jnp.max(jnp.abs(out_f32 - ref)))

    # Full-size grid (m = 45*45 = 2025): single 2048-point tile per batch element,
    # exercising the padded ragged-tail path and the (B, 1) grid.
    grid45 = build_grid(45)
    ref45 = reference(codeword, grid45, params)
    out45 = jax.block_until_ready(folding_decoder_jit(codeword, grid45, params))
    assert out45.shape == (B, 2025, 3), out45.shape
    assert jnp.allclose(out45, ref45, rtol=5e-2, atol=5e-2), \
        float(jnp.max(jnp.abs(out45 - ref45)))
    out45_f32 = jax.block_until_ready(
        folding_decoder_jit(codeword, grid45, params, use_bf16=False))
    assert jnp.allclose(out45_f32, ref45, rtol=1e-4, atol=1e-4), \
        float(jnp.max(jnp.abs(out45_f32 - ref45)))

    print("KERNEL_OK")
</pallas_src>

<mosaic_0001>
module attributes {stable_mosaic.version = 11 : i64} {
  func.func @decoder_kernel(%arg0: i32, %arg1: i32, %arg2: memref<1x256x2xbf16, #tpu.memory_space<vmem>>, %arg3: memref<2x256xbf16, #tpu.memory_space<vmem>>, %arg4: memref<256x2xbf16, #tpu.memory_space<vmem>>, %arg5: memref<64x256xbf16, #tpu.memory_space<vmem>>, %arg6: memref<256x64xbf16, #tpu.memory_space<vmem>>, %arg7: memref<64x256xbf16, #tpu.memory_space<vmem>>, %arg8: memref<3x64xbf16, #tpu.memory_space<vmem>>, %arg9: memref<64x3xf32, #tpu.memory_space<vmem>>, %arg10: memref<1x3x256xf32, #tpu.memory_space<vmem>>) attributes {dimension_semantics = [#tpu.dimension_semantics<parallel>, #tpu.dimension_semantics<parallel>], iteration_bounds = array<i64: 2, 1>, scalar_prefetch = 0 : i64, scratch_operands = 0 : i64, tpu.core_type = #tpu.core_type<tc>, window_params = [{transform_indices = @transform_0, window_bounds = array<i64: 1, 256, 2>}, {transform_indices = @transform_1, window_bounds = array<i64: 2, 256>}, {pipeline_mode = #tpu.pipeline_mode<synchronous>, transform_indices = @transform_2, window_bounds = array<i64: 256, 2>}, {pipeline_mode = #tpu.pipeline_mode<synchronous>, transform_indices = @transform_3, window_bounds = array<i64: 64, 256>}, {pipeline_mode = #tpu.pipeline_mode<synchronous>, transform_indices = @transform_4, window_bounds = array<i64: 256, 64>}, {pipeline_mode = #tpu.pipeline_mode<synchronous>, transform_indices = @transform_5, window_bounds = array<i64: 64, 256>}, {pipeline_mode = #tpu.pipeline_mode<synchronous>, transform_indices = @transform_6, window_bounds = array<i64: 3, 64>}, {pipeline_mode = #tpu.pipeline_mode<synchronous>, transform_indices = @transform_7, window_bounds = array<i64: 64, 3>}, {transform_indices = @transform_8, window_bounds = array<i64: 1, 3, 256>}]} {
    %c0 = arith.constant 0 : index
    %c0_0 = arith.constant 0 : index
    %c0_1 = arith.constant 0 : index
    %0 = vector.load %arg2[%c0, %c0_0, %c0_1] : memref<1x256x2xbf16, #tpu.memory_space<vmem>>, vector<1x256x1xbf16>
    %1 = vector.shape_cast %0 : vector<1x256x1xbf16> to vector<256x1xbf16>
    %c0_2 = arith.constant 0 : index
    %c0_3 = arith.constant 0 : index
    %c1 = arith.constant 1 : index
    %2 = vector.load %arg2[%c0_2, %c0_3, %c1] : memref<1x256x2xbf16, #tpu.memory_space<vmem>>, vector<1x256x1xbf16>
    %3 = vector.shape_cast %2 : vector<1x256x1xbf16> to vector<256x1xbf16>
    %c0_4 = arith.constant 0 : index
    %c0_5 = arith.constant 0 : index
    %4 = vector.load %arg3[%c0_4, %c0_5] : memref<2x256xbf16, #tpu.memory_space<vmem>>, vector<2x256xbf16>
    %5 = vector.extract_strided_slice %4 {offsets = [0, 0], sizes = [1, 256], strides = [1, 1]} : vector<2x256xbf16> to vector<1x256xbf16>
    %6 = vector.extract_strided_slice %4 {offsets = [1, 0], sizes = [1, 256], strides = [1, 1]} : vector<2x256xbf16> to vector<1x256xbf16>
    %c0_6 = arith.constant 0 : index
    %c0_7 = arith.constant 0 : index
    %7 = vector.load %arg9[%c0_6, %c0_7] : memref<64x3xf32, #tpu.memory_space<vmem>>, vector<64x1xf32>
    %c0_8 = arith.constant 0 : index
    %c1_9 = arith.constant 1 : index
    %8 = vector.load %arg9[%c0_8, %c1_9] : memref<64x3xf32, #tpu.memory_space<vmem>>, vector<64x1xf32>
    %c0_10 = arith.constant 0 : index
    %c2 = arith.constant 2 : index
    %9 = vector.load %arg9[%c0_10, %c2] : memref<64x3xf32, #tpu.memory_space<vmem>>, vector<3x1xf32>
    %c0_11 = arith.constant 0 : index
    %c0_12 = arith.constant 0 : index
    %10 = vector.load %arg4[%c0_11, %c0_12] : memref<256x2xbf16, #tpu.memory_space<vmem>>, vector<256x1xbf16>
    %11 = vector.broadcast %10 : vector<256x1xbf16> to vector<256x256xbf16>
    %12 = vector.broadcast %5 : vector<1x256xbf16> to vector<256x256xbf16>
    %13 = arith.mulf %11, %12 : vector<256x256xbf16>
    %14 = vector.broadcast %1 : vector<256x1xbf16> to vector<256x256xbf16>
    %15 = arith.addf %14, %13 : vector<256x256xbf16>
    %c0_13 = arith.constant 0 : index
    %c1_14 = arith.constant 1 : index
    %16 = vector.load %arg4[%c0_13, %c1_14] : memref<256x2xbf16, #tpu.memory_space<vmem>>, vector<256x1xbf16>
    %17 = vector.broadcast %16 : vector<256x1xbf16> to vector<256x256xbf16>
    %18 = vector.broadcast %6 : vector<1x256xbf16> to vector<256x256xbf16>
    %19 = arith.mulf %17, %18 : vector<256x256xbf16>
    %20 = arith.addf %15, %19 : vector<256x256xbf16>
    %cst = arith.constant 0.000000e+00 : bf16
    %21 = vector.broadcast %cst : bf16 to vector<256x256xbf16>
    %22 = arith.maximumf %20, %21 : vector<256x256xbf16>
    %c0_15 = arith.constant 0 : index
    %c0_16 = arith.constant 0 : index
    %23 = vector.load %arg5[%c0_15, %c0_16] : memref<64x256xbf16, #tpu.memory_space<vmem>>, vector<64x256xbf16>
    %cst_17 = arith.constant dense<0.000000e+00> : vector<64x256xf32>
    %24 = tpu.matmul %23, %22, %cst_17 {dimension_numbers = #tpu.dot_dimension_numbers<[1], [0], [0], [1], [0, 0, 1, 1], [], []>} : vector<64x256xbf16>, vector<256x256xbf16>, vector<64x256xf32> -> vector<64x256xf32>
    %25 = vector.broadcast %7 : vector<64x1xf32> to vector<64x256xf32>
    %26 = arith.addf %24, %25 : vector<64x256xf32>
    %cst_18 = arith.constant 0.000000e+00 : f32
    %27 = vector.broadcast %cst_18 : f32 to vector<64x256xf32>
    %28 = arith.maximumf %26, %27 : vector<64x256xf32>
    %c0_19 = arith.constant 0 : index
    %c0_20 = arith.constant 0 : index
    %29 = vector.load %arg6[%c0_19, %c0_20] : memref<256x64xbf16, #tpu.memory_space<vmem>>, vector<256x64xbf16>
    %30 = arith.truncf %28 : vector<64x256xf32> to vector<64x256xbf16>
    %cst_21 = arith.constant dense<0.000000e+00> : vector<256x256xf32>
    %31 = tpu.matmul %29, %30, %cst_21 {dimension_numbers = #tpu.dot_dimension_numbers<[1], [0], [0], [1], [0, 0, 1, 1], [], []>} : vector<256x64xbf16>, vector<64x256xbf16>, vector<256x256xf32> -> vector<256x256xf32>
    %32 = arith.truncf %31 : vector<256x256xf32> to vector<256x256xbf16>
    %33 = vector.broadcast %3 : vector<256x1xbf16> to vector<256x256xbf16>
    %34 = arith.addf %33, %32 : vector<256x256xbf16>
    %cst_22 = arith.constant 0.000000e+00 : bf16
    %35 = vector.broadcast %cst_22 : bf16 to vector<256x256xbf16>
    %36 = arith.maximumf %34, %35 : vector<256x256xbf16>
    %c0_23 = arith.constant 0 : index
    %c0_24 = arith.constant 0 : index
    %37 = vector.load %arg7[%c0_23, %c0_24] : memref<64x256xbf16, #tpu.memory_space<vmem>>, vector<64x256xbf16>
    %cst_25 = arith.constant dense<0.000000e+00> : vector<64x256xf32>
    %38 = tpu.matmul %37, %36, %cst_25 {dimension_numbers = #tpu.dot_dimension_numbers<[1], [0], [0], [1], [0, 0, 1, 1], [], []>} : vector<64x256xbf16>, vector<256x256xbf16>, vector<64x256xf32> -> vector<64x256xf32>
    %39 = vector.broadcast %8 : vector<64x1xf32> to vector<64x256xf32>
    %40 = arith.addf %38, %39 : vector<64x256xf32>
    %cst_26 = arith.constant 0.000000e+00 : f32
    %41 = vector.broadcast %cst_26 : f32 to vector<64x256xf32>
    %42 = arith.maximumf %40, %41 : vector<64x256xf32>
    %c0_27 = arith.constant 0 : index
    %c0_28 = arith.constant 0 : index
    %43 = vector.load %arg8[%c0_27, %c0_28] : memref<3x64xbf16, #tpu.memory_space<vmem>>, vector<3x64xbf16>
    %44 = arith.truncf %42 : vector<64x256xf32> to vector<64x256xbf16>
    %cst_29 = arith.constant dense<0.000000e+00> : vector<3x256xf32>
    %45 = tpu.matmul %43, %44, %cst_29 {dimension_numbers = #tpu.dot_dimension_numbers<[1], [0], [0], [1], [0, 0, 1, 1], [], []>} : vector<3x64xbf16>, vector<64x256xbf16>, vector<3x256xf32> -> vector<3x256xf32>
    %46 = vector.broadcast %9 : vector<3x1xf32> to vector<3x256xf32>
    %47 = arith.addf %45, %46 : vector<3x256xf32>
    %c0_30 = arith.constant 0 : index
    %c0_31 = arith.constant 0 : index
    %c0_32 = arith.constant 0 : index
    %48 = vector.load %arg10[%c0_30, %c0_31, %c0_32] : memref<1x3x256xf32, #tpu.memory_space<vmem>>, vector<1x3x256xf32>
    %49 = vector.shape_cast %48 : vector<1x3x256xf32> to vector<3x256xf32>
    %50 = vector.shape_cast %47 : vector<3x256xf32> to vector<1x3x256xf32>
    tpu.vector_store %arg10[%c0_30, %c0_31, %c0_32], %50 {strides = array<i32>} : memref<1x3x256xf32, #tpu.memory_space<vmem>>, vector<1x3x256xf32>,
    return
  }
  func.func @transform_0(%arg0: i32, %arg1: i32) -> (i32, i32, i32) {
    %c0_i32 = arith.constant 0 : i32
    %c0_i32_0 = arith.constant 0 : i32
    %c0_i32_1 = arith.constant 0 : i32
    return %arg0, %c0_i32, %c0_i32_0 : i32, i32, i32
  }
  func.func @transform_1(%arg0: i32, %arg1: i32) -> (i32, i32) {
    %c0_i32 = arith.constant 0 : i32
    %c0_i32_0 = arith.constant 0 : i32
    return %c0_i32, %arg1 : i32, i32
  }
  func.func @transform_2(%arg0: i32, %arg1: i32) -> (i32, i32) {
    %c0_i32 = arith.constant 0 : i32
    %c0_i32_0 = arith.constant 0 : i32
    %c0_i32_1 = arith.constant 0 : i32
    return %c0_i32, %c0_i32_0 : i32, i32
  }
  func.func @transform_3(%arg0: i32, %arg1: i32) -> (i32, i32) {
    %c0_i32 = arith.constant 0 : i32
    %c0_i32_0 = arith.constant 0 : i32
    %c0_i32_1 = arith.constant 0 : i32
    return %c0_i32, %c0_i32_0 : i32, i32
  }
  func.func @transform_4(%arg0: i32, %arg1: i32) -> (i32, i32) {
    %c0_i32 = arith.constant 0 : i32
    %c0_i32_0 = arith.constant 0 : i32
    %c0_i32_1 = arith.constant 0 : i32
    return %c0_i32, %c0_i32_0 : i32, i32
  }
  func.func @transform_5(%arg0: i32, %arg1: i32) -> (i32, i32) {
    %c0_i32 = arith.constant 0 : i32
    %c0_i32_0 = arith.constant 0 : i32
    %c0_i32_1 = arith.constant 0 : i32
    return %c0_i32, %c0_i32_0 : i32, i32
  }
  func.func @transform_6(%arg0: i32, %arg1: i32) -> (i32, i32) {
    %c0_i32 = arith.constant 0 : i32
    %c0_i32_0 = arith.constant 0 : i32
    %c0_i32_1 = arith.constant 0 : i32
    return %c0_i32, %c0_i32_0 : i32, i32
  }
  func.func @transform_7(%arg0: i32, %arg1: i32) -> (i32, i32) {
    %c0_i32 = arith.constant 0 : i32
    %c0_i32_0 = arith.constant 0 : i32
    %c0_i32_1 = arith.constant 0 : i32
    return %c0_i32, %c0_i32_0 : i32, i32
  }
  func.func @transform_8(%arg0: i32, %arg1: i32) -> (i32, i32, i32) {
    %c0_i32 = arith.constant 0 : i32
    %c0_i32_0 = arith.constant 0 : i32
    return %arg0, %c0_i32, %arg1 : i32, i32, i32
  }
}

</mosaic_0001>

<llo_original>
// kernel: folding_decoder.1
$region0: #{folding_decoder.1}
  #allocation0 [shape = 'u32[]', space=smem, size = 0x4, offset = 0x4, fixed_abs, tag = 'smem constant byte address 0x4 - core index']
  #allocation1 [shape = 'u32[144,128]{1,0:T(1,128)}', space=vmem, size = 0x12000, scoped, tag = 'internal scratch']
  %s0 = inlined_call_operand.vmem [shape: bf16[2,256,2], index: 0, kind: input, shape index: {}]
  %s1 = inlined_call_operand.vmem [shape: bf16[2,256], index: 1, kind: input, shape index: {}]
  %s2 = inlined_call_operand.vmem [shape: bf16[256,2], index: 2, kind: input, shape index: {}]
  %s3 = inlined_call_operand.vmem [shape: bf16[64,256], index: 3, kind: input, shape index: {}]
  %s4 = inlined_call_operand.vmem [shape: bf16[256,64], index: 4, kind: input, shape index: {}]
  %s5 = inlined_call_operand.vmem [shape: bf16[64,256], index: 5, kind: input, shape index: {}]
  %s6 = inlined_call_operand.vmem [shape: bf16[3,64], index: 6, kind: input, shape index: {}]
  %s7 = inlined_call_operand.vmem [shape: f32[64,3], index: 7, kind: input, shape index: {}]
  %s8 = inlined_call_operand.vmem [shape: f32[2,3,256], index: 8, kind: output, shape index: {}]
  %s9 = sld [smem:[#allocation0]]
  $region65: #{folding_decoder.1} parent=0
    _
  %s11 = ssub.s32 1, %s9
  %s12 = scalar_select 0, %s11, %s9
  loop: start=0, step=1, limit=4
  $region2: #{folding_decoder.1} parent=0 // loop_pre_header
    _
  $region3: #{folding_decoder.1} parent=0 // loop_header
    %s14 = sphi 0, %s18
    %p15 = scmp.ge.s32.totalorder %s14, 4
    %s21 = sphi 0, %s33
    %s22 = sphi 0, %s29
    %s23 = sphi 0, %s21
    %s24 = sphi 0, %s22
    %s25 = sphi 0, %s23
    %s26 = sphi 0, %s24
    %s36 = sphi 0, %s38
    %s39 = sphi 0, %s36
    %s40 = sphi 0, %s39
    %s56 = sphi 0, %s40
    %s62 = sphi 0, %s64
    %s65 = sphi 0, %s62
    %s66 = sphi 0, %s65
    %s82 = sphi 0, %s66
    %s86 = sphi 0, %s86
    %s88 = sphi 0, %s86
    %s89 = sphi 0, %s88
    %s103 = sphi 0, %s89
    %s107 = sphi 0, %s107
    %s109 = sphi 0, %s107
    %s110 = sphi 0, %s109
    %s124 = sphi 0, %s110
    %s128 = sphi 0, %s128
    %s130 = sphi 0, %s128
    %s131 = sphi 0, %s130
    %s145 = sphi 0, %s131
    %s149 = sphi 0, %s149
    %s151 = sphi 0, %s149
    %s152 = sphi 0, %s151
    %s166 = sphi 0, %s152
    %s170 = sphi 0, %s170
    %s172 = sphi 0, %s170
    %s173 = sphi 0, %s172
    %s187 = sphi 0, %s173
    %s191 = sphi 0, %s191
    %s193 = sphi 0, %s191
    %s194 = sphi 0, %s193
    %s208 = sphi 0, %s194
    %s216 = sphi 0, %s218
    %s219 = sphi 0, %s216
    %s220 = sphi 0, %s219
    %s236 = sphi 0, %s220
  $region4: #{folding_decoder.1} parent=0 // loop_header_branch
    %17 = sbr.rel (%p15) target = $region8
  $region5: #{folding_decoder.1} parent=0 // loop_body
    %s19 = ssub.s32 %s14, 1
    %s20 = ssub.s32 %s14, 2
    %s27 = sadd.s32 1, %s22
    %p28 = scmp.ge.s32.totalorder %s27, 1
    %s29 = scalar_select %p28, 0, %s27
    %s30 = sadd.s32 1, %s21
    %s31 = scalar_select %p28, %s30, %s21
    %p32 = scmp.ge.s32.totalorder %s31, 2
    %s33 = scalar_select %p32, 0, %s31
    %s34 = ssub.s32 %s21, %s33
    %p35 = scmp.eq.s32.totalorder %s34, 0
    %s37 = sadd.s32 %s36, 1
    %s38 = scalar_select %p35, %s36, %s37
    %p41 = pneg %p35
    %p42 = scmp.eq.s32.totalorder %s14, 1
    %p43 = por %p41, %p42
    %p44 = scmp.ne.s32.totalorder %s36, %s39
    %p45 = scmp.eq.s32.totalorder %s14, 0
    %p46 = por %p44, %p45
    %p47 = scmp.ne.s32.totalorder %s36, %s39
    %p48 = scmp.eq.s32.totalorder %s19, 1
    %p49 = por %p47, %p48
    %p50 = scmp.ne.s32.totalorder %s39, %s40
    %p51 = scmp.eq.s32.totalorder %s19, 0
    %p52 = por %p50, %p51
    %p53 = scmp.ne.s32.totalorder %s39, %s40
    %p54 = scmp.eq.s32.totalorder %s20, 1
    %p55 = por %p53, %p54
    %p57 = scmp.ne.s32.totalorder %s40, %s56
    %p58 = scmp.eq.s32.totalorder %s20, 0
    %p59 = por %p57, %p58
    %s60 = ssub.s32 %s22, %s29
    %p61 = scmp.eq.s32.totalorder %s60, 0
    %s63 = sadd.s32 %s62, 1
    %s64 = scalar_select %p61, %s62, %s63
    %p67 = pneg %p61
    %p68 = scmp.eq.s32.totalorder %s14, 1
    %p69 = por %p67, %p68
    %p70 = scmp.ne.s32.totalorder %s62, %s65
    %p71 = scmp.eq.s32.totalorder %s14, 0
    %p72 = por %p70, %p71
    %p73 = scmp.ne.s32.totalorder %s62, %s65
    %p74 = scmp.eq.s32.totalorder %s19, 1
    %p75 = por %p73, %p74
    %p76 = scmp.ne.s32.totalorder %s65, %s66
    %p77 = scmp.eq.s32.totalorder %s19, 0
    %p78 = por %p76, %p77
    %p79 = scmp.ne.s32.totalorder %s65, %s66
    %p80 = scmp.eq.s32.totalorder %s20, 1
    %p81 = por %p79, %p80
    %p83 = scmp.ne.s32.totalorder %s66, %s82
    %p84 = scmp.eq.s32.totalorder %s20, 0
    %p85 = por %p83, %p84
    %s87 = sadd.s32 %s86, 1
    %p90 = scmp.eq.s32.totalorder %s14, 1
    %p91 = scmp.ne.s32.totalorder %s86, %s88
    %p92 = scmp.eq.s32.totalorder %s14, 0
    %p93 = por %p91, %p92
    %p94 = scmp.ne.s32.totalorder %s86, %s88
    %p95 = scmp.eq.s32.totalorder %s19, 1
    %p96 = por %p94, %p95
    %p97 = scmp.ne.s32.totalorder %s88, %s89
    %p98 = scmp.eq.s32.totalorder %s19, 0
    %p99 = por %p97, %p98
    %p100 = scmp.ne.s32.totalorder %s88, %s89
    %p101 = scmp.eq.s32.totalorder %s20, 1
    %p102 = por %p100, %p101
    %p104 = scmp.ne.s32.totalorder %s89, %s103
    %p105 = scmp.eq.s32.totalorder %s20, 0
    %p106 = por %p104, %p105
    %s108 = sadd.s32 %s107, 1
    %p111 = scmp.eq.s32.totalorder %s14, 1
    %p112 = scmp.ne.s32.totalorder %s107, %s109
    %p113 = scmp.eq.s32.totalorder %s14, 0
    %p114 = por %p112, %p113
    %p115 = scmp.ne.s32.totalorder %s107, %s109
    %p116 = scmp.eq.s32.totalorder %s19, 1
    %p117 = por %p115, %p116
    %p118 = scmp.ne.s32.totalorder %s109, %s110
    %p119 = scmp.eq.s32.totalorder %s19, 0
    %p120 = por %p118, %p119
    %p121 = scmp.ne.s32.totalorder %s109, %s110
    %p122 = scmp.eq.s32.totalorder %s20, 1
    %p123 = por %p121, %p122
    %p125 = scmp.ne.s32.totalorder %s110, %s124
    %p126 = scmp.eq.s32.totalorder %s20, 0
    %p127 = por %p125, %p126
    %s129 = sadd.s32 %s128, 1
    %p132 = scmp.eq.s32.totalorder %s14, 1
    %p133 = scmp.ne.s32.totalorder %s128, %s130
    %p134 = scmp.eq.s32.totalorder %s14, 0
    %p135 = por %p133, %p134
    %p136 = scmp.ne.s32.totalorder %s128, %s130
    %p137 = scmp.eq.s32.totalorder %s19, 1
    %p138 = por %p136, %p137
    %p139 = scmp.ne.s32.totalorder %s130, %s131
    %p140 = scmp.eq.s32.totalorder %s19, 0
    %p141 = por %p139, %p140
    %p142 = scmp.ne.s32.totalorder %s130, %s131
    %p143 = scmp.eq.s32.totalorder %s20, 1
    %p144 = por %p142, %p143
    %p146 = scmp.ne.s32.totalorder %s131, %s145
    %p147 = scmp.eq.s32.totalorder %s20, 0
    %p148 = por %p146, %p147
    %s150 = sadd.s32 %s149, 1
    %p153 = scmp.eq.s32.totalorder %s14, 1
    %p154 = scmp.ne.s32.totalorder %s149, %s151
    %p155 = scmp.eq.s32.totalorder %s14, 0
    %p156 = por %p154, %p155
    %p157 = scmp.ne.s32.totalorder %s149, %s151
    %p158 = scmp.eq.s32.totalorder %s19, 1
    %p159 = por %p157, %p158
    %p160 = scmp.ne.s32.totalorder %s151, %s152
    %p161 = scmp.eq.s32.totalorder %s19, 0
    %p162 = por %p160, %p161
    %p163 = scmp.ne.s32.totalorder %s151, %s152
    %p164 = scmp.eq.s32.totalorder %s20, 1
    %p165 = por %p163, %p164
    %p167 = scmp.ne.s32.totalorder %s152, %s166
    %p168 = scmp.eq.s32.totalorder %s20, 0
    %p169 = por %p167, %p168
    %s171 = sadd.s32 %s170, 1
    %p174 = scmp.eq.s32.totalorder %s14, 1
    %p175 = scmp.ne.s32.totalorder %s170, %s172
    %p176 = scmp.eq.s32.totalorder %s14, 0
    %p177 = por %p175, %p176
    %p178 = scmp.ne.s32.totalorder %s170, %s172
    %p179 = scmp.eq.s32.totalorder %s19, 1
    %p180 = por %p178, %p179
    %p181 = scmp.ne.s32.totalorder %s172, %s173
    %p182 = scmp.eq.s32.totalorder %s19, 0
    %p183 = por %p181, %p182
    %p184 = scmp.ne.s32.totalorder %s172, %s173
    %p185 = scmp.eq.s32.totalorder %s20, 1
    %p186 = por %p184, %p185
    %p188 = scmp.ne.s32.totalorder %s173, %s187
    %p189 = scmp.eq.s32.totalorder %s20, 0
    %p190 = por %p188, %p189
    %s192 = sadd.s32 %s191, 1
    %p195 = scmp.eq.s32.totalorder %s14, 1
    %p196 = scmp.ne.s32.totalorder %s191, %s193
    %p197 = scmp.eq.s32.totalorder %s14, 0
    %p198 = por %p196, %p197
    %p199 = scmp.ne.s32.totalorder %s191, %s193
    %p200 = scmp.eq.s32.totalorder %s19, 1
    %p201 = por %p199, %p200
    %p202 = scmp.ne.s32.totalorder %s193, %s194
    %p203 = scmp.eq.s32.totalorder %s19, 0
    %p204 = por %p202, %p203
    %p205 = scmp.ne.s32.totalorder %s193, %s194
    %p206 = scmp.eq.s32.totalorder %s20, 1
    %p207 = por %p205, %p206
    %p209 = scmp.ne.s32.totalorder %s194, %s208
    %p210 = scmp.eq.s32.totalorder %s20, 0
    %p211 = por %p209, %p210
    %s212 = ssub.s32 %s21, %s33
    %s213 = ssub.s32 %s22, %s29
    %s214 = sor.u32 %s212, %s213
    %p215 = scmp.eq.s32.totalorder %s214, 0
    %s217 = sadd.s32 %s216, 1
    %s218 = scalar_select %p215, %s216, %s217
    %p221 = pneg %p215
    %p222 = scmp.eq.s32.totalorder %s14, 1
    %p223 = por %p221, %p222
    %p224 = scmp.ne.s32.totalorder %s216, %s219
    %p225 = scmp.eq.s32.totalorder %s14, 0
    %p226 = por %p224, %p225
    %p227 = scmp.ne.s32.totalorder %s216, %s219
    %p228 = scmp.eq.s32.totalorder %s19, 1
    %p229 = por %p227, %p228
    %p230 = scmp.ne.s32.totalorder %s219, %s220
    %p231 = scmp.eq.s32.totalorder %s19, 0
    %p232 = por %p230, %p231
    %p233 = scmp.ne.s32.totalorder %s219, %s220
    %p234 = scmp.eq.s32.totalorder %s20, 1
    %p235 = por %p233, %p234
    %p237 = scmp.ne.s32.totalorder %s220, %s236
    %p238 = scmp.eq.s32.totalorder %s20, 0
    %p239 = por %p237, %p238
    %p240 = scmp.le.s32.totalorder 1, %s14
    %p241 = scmp.lt.s32.totalorder %s14, 3
    %p242 = pnand %p240, %p241
    %p243 = pneg %p242
    // Predicated region
    $region9: #{folding_decoder.1} parent=5 // pred_check
      _
    $region10: #{folding_decoder.1} parent=5 // pred_check_branch
      %245 = sbr.rel (%p242) target = $region12
    $region11: #{folding_decoder.1} parent=5 // pred_region
      %s246 = ssub.s32 %s14, 1
      // Predicated region
      $region13: #{folding_decoder.1} parent=11 // pred_check
        %p247 = pneg %p78
      $region14: #{folding_decoder.1} parent=11 // pred_check_branch
        %249 = sbr.rel (%p247) target = $region16
      $region15: #{folding_decoder.1} parent=11 // pred_region
        %s250 = smul.u32 2, %s24
        %p251 = scmp.lt.s32.totalorder %s250, 1
        %s252 = scalar_select %p251, %s250, 1
        %s253 = scalar_lea.vmem %s1, %s252
        %s254 = smul.u32 2, %s24
      $region16: #{folding_decoder.1} parent=11 // pred_fallthru
        _
      // Predicated region
      $region17: #{folding_decoder.1} parent=11 // pred_check
        %p255 = pneg %p99
      $region18: #{folding_decoder.1} parent=11 // pred_check_branch
        %257 = sbr.rel (%p255) target = $region20
      $region19: #{folding_decoder.1} parent=11 // pred_region
        _
      $region20: #{folding_decoder.1} parent=11 // pred_fallthru
        _
      // Predicated region
      $region21: #{folding_decoder.1} parent=11 // pred_check
        %p258 = pneg %p120
      $region22: #{folding_decoder.1} parent=11 // pred_check_branch
        %260 = sbr.rel (%p258) target = $region24
      $region23: #{folding_decoder.1} parent=11 // pred_region
        _
      $region24: #{folding_decoder.1} parent=11 // pred_fallthru
        _
      // Predicated region
      $region25: #{folding_decoder.1} parent=11 // pred_check
        %p261 = pneg %p141
      $region26: #{folding_decoder.1} parent=11 // pred_check_branch
        %263 = sbr.rel (%p261) target = $region28
      $region27: #{folding_decoder.1} parent=11 // pred_region
        _
      $region28: #{folding_decoder.1} parent=11 // pred_fallthru
        _
      // Predicated region
      $region29: #{folding_decoder.1} parent=11 // pred_check
        %p264 = pneg %p162
      $region30: #{folding_decoder.1} parent=11 // pred_check_branch
        %266 = sbr.rel (%p264) target = $region32
      $region31: #{folding_decoder.1} parent=11 // pred_region
        _
      $region32: #{folding_decoder.1} parent=11 // pred_fallthru
        _
      // Predicated region
      $region33: #{folding_decoder.1} parent=11 // pred_check
        %p267 = pneg %p183
      $region34: #{folding_decoder.1} parent=11 // pred_check_branch
        %269 = sbr.rel (%p267) target = $region36
      $region35: #{folding_decoder.1} parent=11 // pred_region
        _
      $region36: #{folding_decoder.1} parent=11 // pred_fallthru
        _
      // Predicated region
      $region37: #{folding_decoder.1} parent=11 // pred_check
        %p270 = pneg %p204
      $region38: #{folding_decoder.1} parent=11 // pred_check_branch
        %272 = sbr.rel (%p270) target = $region40
      $region39: #{folding_decoder.1} parent=11 // pred_region
        _
      $region40: #{folding_decoder.1} parent=11 // pred_fallthru
        _
    $region12: #{folding_decoder.1} parent=5 // pred_fallthru
      _
    %p273 = scmp.lt.s32.totalorder %s14, 2
    // Predicated region
    $region41: #{folding_decoder.1} parent=5 // pred_check
      %p274 = pneg %p273
    $region42: #{folding_decoder.1} parent=5 // pred_check_branch
      %276 = sbr.rel (%p274) target = $region44
    $region43: #{folding_decoder.1} parent=5 // pred_region
      // Predicated region
      $region45: #{folding_decoder.1} parent=43 // pred_check
        %p277 = pneg %p46
      $region46: #{folding_decoder.1} parent=43 // pred_check_branch
        %279 = sbr.rel (%p277) target = $region48
      $region47: #{folding_decoder.1} parent=43 // pred_region
        %p280 = scmp.lt.s32.totalorder %s21, 1
        %s281 = scalar_select %p280, %s21, 1
        %s282 = smul.addr %s281, 32
        %s283 = smul.addr %s282, 4
        %s284 = scalar_lea.vmem %s0, %s283
      $region48: #{folding_decoder.1} parent=43 // pred_fallthru
        _
    $region44: #{folding_decoder.1} parent=5 // pred_fallthru
      _
    %p285 = scmp.le.s32.totalorder 1, %s14
    %p286 = scmp.lt.s32.totalorder %s14, 3
    %p287 = pnand %p285, %p286
    %p288 = pneg %p287
    // Predicated region
    $region49: #{folding_decoder.1} parent=5 // pred_check
      _
    $region50: #{folding_decoder.1} parent=5 // pred_check_branch
      %290 = sbr.rel (%p287) target = $region52
    $region51: #{folding_decoder.1} parent=5 // pred_region
      %s291 = ssub.s32 %s14, 1
      %p292 = scmp.lt.s32.totalorder %s23, 1
      %s293 = scalar_select %p292, %s23, 1
      %s294 = smul.addr %s293, 32
      %s295 = smul.addr %s294, 4
      %s296 = scalar_lea.vmem %s0, %s295
      %p297 = pneg %p52
      %p298 = pneg %p49
      %s299 = smul.u32 2, %s24
      %p300 = scmp.lt.s32.totalorder %s299, 1
      %s301 = scalar_select %p300, %s299, 1
      %s302 = scalar_lea.vmem %s1, %s301
      %p303 = pneg %p78
      %p304 = pneg %p75
      %p305 = pneg %p99
      %p306 = pneg %p96
      %p307 = pneg %p120
      %p308 = pneg %p117
      %p309 = pneg %p141
      %p310 = pneg %p138
      %p311 = pneg %p162
      %p312 = pneg %p159
      %p313 = pneg %p183
      %p314 = pneg %p180
      %p315 = pneg %p204
      %p316 = pneg %p201
      %p317 = pneg %p232
      %p318 = pneg %p229
      %s319 = smul.u32 2, %s24
      %p320 = scmp.lt.s32.totalorder %s23, 1
      %s321 = scalar_select %p320, %s23, 1
      %p322 = scmp.lt.s32.totalorder %s319, 1
      %s323 = scalar_select %p322, %s319, 1
      %s324 = smul.addr %s321, 2
      %s325 = sadd.s32 %s323, %s324
      %s326 = smul.addr %s325, 4
      %s327 = scalar_lea.vmem %s8, %s326
      %p328 = scmp.lt.s32.totalorder %s23, 1
      %s329 = scalar_select %p328, %s23, 1
      %s330 = smul.addr %s329, 32
      %s331 = smul.addr %s330, 4
      %s332 = scalar_lea.vmem %s0, %s331
      %s333 = smul.u32 2, %s24
      %p334 = scmp.lt.s32.totalorder %s333, 1
      %s335 = scalar_select %p334, %s333, 1
      %s336 = scalar_lea.vmem %s1, %s335
      %s337 = smul.u32 2, %s24
      %s338 = smul.u32 2, %s24
      %p339 = scmp.lt.s32.totalorder %s23, 1
      %s340 = scalar_select %p339, %s23, 1
      %p341 = scmp.lt.s32.totalorder %s338, 1
      %s342 = scalar_select %p341, %s338, 1
      %s343 = smul.addr %s340, 2
      %s344 = sadd.s32 %s342, %s343
      %s345 = smul.addr %s344, 4
      %s346 = scalar_lea.vmem %s8, %s345
      %s347 = smul.u32 2, %s24
      %v349 = vld [vmem:[%s332] sm:$0xf]
      %v350 = vld [vmem:[%s332 + $0x4] sm:$0xf]
      %v351 = vld [vmem:[%s332 + $0x8] sm:$0xf]
      %v352 = vld [vmem:[%s332 + $0xc] sm:$0xf]
      %v353 = vld [vmem:[%s332 + $0x10] sm:$0xf]
      %v354 = vld [vmem:[%s332 + $0x14] sm:$0xf]
      %v355 = vld [vmem:[%s332 + $0x18] sm:$0xf]
      %v356 = vld [vmem:[%s332 + $0x1c] sm:$0xf]
      %v357 = vld [vmem:[%s332 + $0x20] sm:$0xf]
      %v358 = vld [vmem:[%s332 + $0x24] sm:$0xf]
      %v359 = vld [vmem:[%s332 + $0x28] sm:$0xf]
      %v360 = vld [vmem:[%s332 + $0x2c] sm:$0xf]
      %v361 = vld [vmem:[%s332 + $0x30] sm:$0xf]
      %v362 = vld [vmem:[%s332 + $0x34] sm:$0xf]
      %v363 = vld [vmem:[%s332 + $0x38] sm:$0xf]
      %v364 = vld [vmem:[%s332 + $0x3c] sm:$0xf]
      %v365 = vld [vmem:[%s332 + $0x40] sm:$0xf]
      %v366 = vld [vmem:[%s332 + $0x44] sm:$0xf]
      %v367 = vld [vmem:[%s332 + $0x48] sm:$0xf]
      %v368 = vld [vmem:[%s332 + $0x4c] sm:$0xf]
      %v369 = vld [vmem:[%s332 + $0x50] sm:$0xf]
      %v370 = vld [vmem:[%s332 + $0x54] sm:$0xf]
      %v371 = vld [vmem:[%s332 + $0x58] sm:$0xf]
      %v372 = vld [vmem:[%s332 + $0x5c] sm:$0xf]
      %v373 = vld [vmem:[%s332 + $0x60] sm:$0xf]
      %v374 = vld [vmem:[%s332 + $0x64] sm:$0xf]
      %v375 = vld [vmem:[%s332 + $0x68] sm:$0xf]
      %v376 = vld [vmem:[%s332 + $0x6c] sm:$0xf]
      %v377 = vld [vmem:[%s332 + $0x70] sm:$0xf]
      %v378 = vld [vmem:[%s332 + $0x74] sm:$0xf]
      %v379 = vld [vmem:[%s332 + $0x78] sm:$0xf]
      %v380 = vld [vmem:[%s332 + $0x7c] sm:$0xf]
      %v381 = vld [vmem:[%s336] sm:$0x3]
      %v382 = vld [vmem:[%s7] sm:$0xff]
      %v383 = vld [vmem:[%s7 + $0x8] sm:$0xff]
      %v384 = vld [vmem:[%s7 + $0x10] sm:$0xff]
      %v385 = vld [vmem:[%s7 + $0x18] sm:$0xff]
      %v386 = vld [vmem:[%s7 + $0x20] sm:$0xff]
      %v387 = vld [vmem:[%s7 + $0x28] sm:$0xff]
      %v388 = vld [vmem:[%s7 + $0x30] sm:$0xff]
      %v389 = vld [vmem:[%s7 + $0x38] sm:$0xff]
      %v390 = vld [vmem:[%s7] sm:$0x7]
      %v391 = vld [vmem:[%s2] sm:$0xf]
      %v392 = vld [vmem:[%s2 + $0x4] sm:$0xf]
      %v393 = vld [vmem:[%s2 + $0x8] sm:$0xf]
      %v394 = vld [vmem:[%s2 + $0xc] sm:$0xf]
      %v395 = vld [vmem:[%s2 + $0x10] sm:$0xf]
      %v396 = vld [vmem:[%s2 + $0x14] sm:$0xf]
      %v397 = vld [vmem:[%s2 + $0x18] sm:$0xf]
      %v398 = vld [vmem:[%s2 + $0x1c] sm:$0xf]
      %v399 = vld [vmem:[%s2 + $0x20] sm:$0xf]
      %v400 = vld [vmem:[%s2 + $0x24] sm:$0xf]
      %v401 = vld [vmem:[%s2 + $0x28] sm:$0xf]
      %v402 = vld [vmem:[%s2 + $0x2c] sm:$0xf]
      %v403 = vld [vmem:[%s2 + $0x30] sm:$0xf]
      %v404 = vld [vmem:[%s2 + $0x34] sm:$0xf]
      %v405 = vld [vmem:[%s2 + $0x38] sm:$0xf]
      %v406 = vld [vmem:[%s2 + $0x3c] sm:$0xf]
      %v407 = vld [vmem:[%s2 + $0x40] sm:$0xf]
      %v408 = vld [vmem:[%s2 + $0x44] sm:$0xf]
      %v409 = vld [vmem:[%s2 + $0x48] sm:$0xf]
      %v410 = vld [vmem:[%s2 + $0x4c] sm:$0xf]
      %v411 = vld [vmem:[%s2 + $0x50] sm:$0xf]
      %v412 = vld [vmem:[%s2 + $0x54] sm:$0xf]
      %v413 = vld [vmem:[%s2 + $0x58] sm:$0xf]
      %v414 = vld [vmem:[%s2 + $0x5c] sm:$0xf]
      %v415 = vld [vmem:[%s2 + $0x60] sm:$0xf]
      %v416 = vld [vmem:[%s2 + $0x64] sm:$0xf]
      %v417 = vld [vmem:[%s2 + $0x68] sm:$0xf]
      %v418 = vld [vmem:[%s2 + $0x6c] sm:$0xf]
      %v419 = vld [vmem:[%s2 + $0x70] sm:$0xf]
      %v420 = vld [vmem:[%s2 + $0x74] sm:$0xf]
      %v421 = vld [vmem:[%s2 + $0x78] sm:$0xf]
      %v422 = vld [vmem:[%s2 + $0x7c] sm:$0xf]
      %424 = vset.pattern.permute.xlu0 0
      %425 = vperm.xlu0 %424, %v391
      %v426 = vpop.permute.xlu0 %425
      %v429 = vunpack.c.l.s4 839922192
      %v430 = vunpack.c.0.s8 %v429
      %v431 = vlaneseq
      %v432 = vshrl.u32 %v431, 7
      %v433 = vsub.s32 %v430, %v432
      %v434 = vrot.slane %v426, %v433
      %436 = vset.pattern.permute.xlu0 0
      %437 = vperm.xlu0 %436, %v392
      %v438 = vpop.permute.xlu0 %437
      %v441 = vunpack.c.l.s4 839922192
      %v442 = vunpack.c.0.s8 %v441
      %v443 = vlaneseq
      %v444 = vshrl.u32 %v443, 7
      %v445 = vsub.s32 %v442, %v444
      %v446 = vrot.slane %v438, %v445
      %448 = vset.pattern.permute.xlu0 0
      %449 = vperm.xlu0 %448, %v393
      %v450 = vpop.permute.xlu0 %449
      %v453 = vunpack.c.l.s4 839922192
      %v454 = vunpack.c.0.s8 %v453
      %v455 = vlaneseq
      %v456 = vshrl.u32 %v455, 7
      %v457 = vsub.s32 %v454, %v456
      %v458 = vrot.slane %v450, %v457
      %460 = vset.pattern.permute.xlu0 0
      %461 = vperm.xlu0 %460, %v394
      %v462 = vpop.permute.xlu0 %461
      %v465 = vunpack.c.l.s4 839922192
      %v466 = vunpack.c.0.s8 %v465
      %v467 = vlaneseq
      %v468 = vshrl.u32 %v467, 7
      %v469 = vsub.s32 %v466, %v468
      %v470 = vrot.slane %v462, %v469
      %472 = vset.pattern.permute.xlu0 0
      %473 = vperm.xlu0 %472, %v395
      %v474 = vpop.permute.xlu0 %473
      %v477 = vunpack.c.l.s4 839922192
      %v478 = vunpack.c.0.s8 %v477
      %v479 = vlaneseq
      %v480 = vshrl.u32 %v479, 7
      %v481 = vsub.s32 %v478, %v480
      %v482 = vrot.slane %v474, %v481
      %484 = vset.pattern.permute.xlu0 0
      %485 = vperm.xlu0 %484, %v396
      %v486 = vpop.permute.xlu0 %485
      %v489 = vunpack.c.l.s4 839922192
      %v490 = vunpack.c.0.s8 %v489
      %v491 = vlaneseq
      %v492 = vshrl.u32 %v491, 7
      %v493 = vsub.s32 %v490, %v492
      %v494 = vrot.slane %v486, %v493
      %496 = vset.pattern.permute.xlu0 0
      %497 = vperm.xlu0 %496, %v397
      %v498 = vpop.permute.xlu0 %497
      %v501 = vunpack.c.l.s4 839922192
      %v502 = vunpack.c.0.s8 %v501
      %v503 = vlaneseq
      %v504 = vshrl.u32 %v503, 7
      %v505 = vsub.s32 %v502, %v504
      %v506 = vrot.slane %v498, %v505
      %508 = vset.pattern.permute.xlu0 0
      %509 = vperm.xlu0 %508, %v398
      %v510 = vpop.permute.xlu0 %509
      %v513 = vunpack.c.l.s4 839922192
      %v514 = vunpack.c.0.s8 %v513
      %v515 = vlaneseq
      %v516 = vshrl.u32 %v515, 7
      %v517 = vsub.s32 %v514, %v516
      %v518 = vrot.slane %v510, %v517
      %520 = vset.pattern.permute.xlu0 0
      %521 = vperm.xlu0 %520, %v399
      %v522 = vpop.permute.xlu0 %521
      %v525 = vunpack.c.l.s4 839922192
      %v526 = vunpack.c.0.s8 %v525
      %v527 = vlaneseq
      %v528 = vshrl.u32 %v527, 7
      %v529 = vsub.s32 %v526, %v528
      %v530 = vrot.slane %v522, %v529
      %532 = vset.pattern.permute.xlu0 0
      %533 = vperm.xlu0 %532, %v400
      %v534 = vpop.permute.xlu0 %533
      %v537 = vunpack.c.l.s4 839922192
      %v538 = vunpack.c.0.s8 %v537
      %v539 = vlaneseq
      %v540 = vshrl.u32 %v539, 7
      %v541 = vsub.s32 %v538, %v540
      %v542 = vrot.slane %v534, %v541
      %544 = vset.pattern.permute.xlu0 0
      %545 = vperm.xlu0 %544, %v401
      %v546 = vpop.permute.xlu0 %545
      %v549 = vunpack.c.l.s4 839922192
      %v550 = vunpack.c.0.s8 %v549
      %v551 = vlaneseq
      %v552 = vshrl.u32 %v551, 7
      %v553 = vsub.s32 %v550, %v552
      %v554 = vrot.slane %v546, %v553
      %556 = vset.pattern.permute.xlu0 0
      %557 = vperm.xlu0 %556, %v402
      %v558 = vpop.permute.xlu0 %557
      %v561 = vunpack.c.l.s4 839922192
      %v562 = vunpack.c.0.s8 %v561
      %v563 = vlaneseq
      %v564 = vshrl.u32 %v563, 7
      %v565 = vsub.s32 %v562, %v564
      %v566 = vrot.slane %v558, %v565
      %568 = vset.pattern.permute.xlu0 0
      %569 = vperm.xlu0 %568, %v403
      %v570 = vpop.permute.xlu0 %569
      %v573 = vunpack.c.l.s4 839922192
      %v574 = vunpack.c.0.s8 %v573
      %v575 = vlaneseq
      %v576 = vshrl.u32 %v575, 7
      %v577 = vsub.s32 %v574, %v576
      %v578 = vrot.slane %v570, %v577
      %580 = vset.pattern.permute.xlu0 0
      %581 = vperm.xlu0 %580, %v404
      %v582 = vpop.permute.xlu0 %581
      %v585 = vunpack.c.l.s4 839922192
      %v586 = vunpack.c.0.s8 %v585
      %v587 = vlaneseq
      %v588 = vshrl.u32 %v587, 7
      %v589 = vsub.s32 %v586, %v588
      %v590 = vrot.slane %v582, %v589
      %592 = vset.pattern.permute.xlu0 0
      %593 = vperm.xlu0 %592, %v405
      %v594 = vpop.permute.xlu0 %593
      %v597 = vunpack.c.l.s4 839922192
      %v598 = vunpack.c.0.s8 %v597
      %v599 = vlaneseq
      %v600 = vshrl.u32 %v599, 7
      %v601 = vsub.s32 %v598, %v600
      %v602 = vrot.slane %v594, %v601
      %604 = vset.pattern.permute.xlu0 0
      %605 = vperm.xlu0 %604, %v406
      %v606 = vpop.permute.xlu0 %605
      %v609 = vunpack.c.l.s4 839922192
      %v610 = vunpack.c.0.s8 %v609
      %v611 = vlaneseq
      %v612 = vshrl.u32 %v611, 7
      %v613 = vsub.s32 %v610, %v612
      %v614 = vrot.slane %v606, %v613
      %616 = vset.pattern.permute.xlu0 0
      %617 = vperm.xlu0 %616, %v407
      %v618 = vpop.permute.xlu0 %617
      %v621 = vunpack.c.l.s4 839922192
      %v622 = vunpack.c.0.s8 %v621
      %v623 = vlaneseq
      %v624 = vshrl.u32 %v623, 7
      %v625 = vsub.s32 %v622, %v624
      %v626 = vrot.slane %v618, %v625
      %628 = vset.pattern.permute.xlu0 0
      %629 = vperm.xlu0 %628, %v408
      %v630 = vpop.permute.xlu0 %629
      %v633 = vunpack.c.l.s4 839922192
      %v634 = vunpack.c.0.s8 %v633
      %v635 = vlaneseq
      %v636 = vshrl.u32 %v635, 7
      %v637 = vsub.s32 %v634, %v636
      %v638 = vrot.slane %v630, %v637
      %640 = vset.pattern.permute.xlu0 0
      %641 = vperm.xlu0 %640, %v409
      %v642 = vpop.permute.xlu0 %641
      %v645 = vunpack.c.l.s4 839922192
      %v646 = vunpack.c.0.s8 %v645
      %v647 = vlaneseq
      %v648 = vshrl.u32 %v647, 7
      %v649 = vsub.s32 %v646, %v648
      %v650 = vrot.slane %v642, %v649
      %652 = vset.pattern.permute.xlu0 0
      %653 = vperm.xlu0 %652, %v410
      %v654 = vpop.permute.xlu0 %653
      %v657 = vunpack.c.l.s4 839922192
      %v658 = vunpack.c.0.s8 %v657
      %v659 = vlaneseq
      %v660 = vshrl.u32 %v659, 7
      %v661 = vsub.s32 %v658, %v660
      %v662 = vrot.slane %v654, %v661
      %664 = vset.pattern.permute.xlu0 0
      %665 = vperm.xlu0 %664, %v411
      %v666 = vpop.permute.xlu0 %665
      %v669 = vunpack.c.l.s4 839922192
      %v670 = vunpack.c.0.s8 %v669
      %v671 = vlaneseq
      %v672 = vshrl.u32 %v671, 7
      %v673 = vsub.s32 %v670, %v672
      %v674 = vrot.slane %v666, %v673
      %676 = vset.pattern.permute.xlu0 0
      %677 = vperm.xlu0 %676, %v412
      %v678 = vpop.permute.xlu0 %677
      %v681 = vunpack.c.l.s4 839922192
      %v682 = vunpack.c.0.s8 %v681
      %v683 = vlaneseq
      %v684 = vshrl.u32 %v683, 7
      %v685 = vsub.s32 %v682, %v684
      %v686 = vrot.slane %v678, %v685
      %688 = vset.pattern.permute.xlu0 0
      %689 = vperm.xlu0 %688, %v413
      %v690 = vpop.permute.xlu0 %689
      %v693 = vunpack.c.l.s4 839922192
      %v694 = vunpack.c.0.s8 %v693
      %v695 = vlaneseq
      %v696 = vshrl.u32 %v695, 7
      %v697 = vsub.s32 %v694, %v696
      %v698 = vrot.slane %v690, %v697
      %700 = vset.pattern.permute.xlu0 0
      %701 = vperm.xlu0 %700, %v414
      %v702 = vpop.permute.xlu0 %701
      %v705 = vunpack.c.l.s4 839922192
      %v706 = vunpack.c.0.s8 %v705
      %v707 = vlaneseq
      %v708 = vshrl.u32 %v707, 7
      %v709 = vsub.s32 %v706, %v708
      %v710 = vrot.slane %v702, %v709
      %712 = vset.pattern.permute.xlu0 0
      %713 = vperm.xlu0 %712, %v415
      %v714 = vpop.permute.xlu0 %713
      %v717 = vunpack.c.l.s4 839922192
      %v718 = vunpack.c.0.s8 %v717
      %v719 = vlaneseq
      %v720 = vshrl.u32 %v719, 7
      %v721 = vsub.s32 %v718, %v720
      %v722 = vrot.slane %v714, %v721
      %724 = vset.pattern.permute.xlu0 0
      %725 = vperm.xlu0 %724, %v416
      %v726 = vpop.permute.xlu0 %725
      %v729 = vunpack.c.l.s4 839922192
      %v730 = vunpack.c.0.s8 %v729
      %v731 = vlaneseq
      %v732 = vshrl.u32 %v731, 7
      %v733 = vsub.s32 %v730, %v732
      %v734 = vrot.slane %v726, %v733
      %736 = vset.pattern.permute.xlu0 0
      %737 = vperm.xlu0 %736, %v417
      %v738 = vpop.permute.xlu0 %737
      %v741 = vunpack.c.l.s4 839922192
      %v742 = vunpack.c.0.s8 %v741
      %v743 = vlaneseq
      %v744 = vshrl.u32 %v743, 7
      %v745 = vsub.s32 %v742, %v744
      %v746 = vrot.slane %v738, %v745
      %748 = vset.pattern.permute.xlu0 0
      %749 = vperm.xlu0 %748, %v418
      %v750 = vpop.permute.xlu0 %749
      %v753 = vunpack.c.l.s4 839922192
      %v754 = vunpack.c.0.s8 %v753
      %v755 = vlaneseq
      %v756 = vshrl.u32 %v755, 7
      %v757 = vsub.s32 %v754, %v756
      %v758 = vrot.slane %v750, %v757
      %760 = vset.pattern.permute.xlu0 0
      %761 = vperm.xlu0 %760, %v419
      %v762 = vpop.permute.xlu0 %761
      %v765 = vunpack.c.l.s4 839922192
      %v766 = vunpack.c.0.s8 %v765
      %v767 = vlaneseq
      %v768 = vshrl.u32 %v767, 7
      %v769 = vsub.s32 %v766, %v768
      %v770 = vrot.slane %v762, %v769
      %772 = vset.pattern.permute.xlu0 0
      %773 = vperm.xlu0 %772, %v420
      %v774 = vpop.permute.xlu0 %773
      %v777 = vunpack.c.l.s4 839922192
      %v778 = vunpack.c.0.s8 %v777
      %v779 = vlaneseq
      %v780 = vshrl.u32 %v779, 7
      %v781 = vsub.s32 %v778, %v780
      %v782 = vrot.slane %v774, %v781
      %784 = vset.pattern.permute.xlu0 0
      %785 = vperm.xlu0 %784, %v421
      %v786 = vpop.permute.xlu0 %785
      %v789 = vunpack.c.l.s4 839922192
      %v790 = vunpack.c.0.s8 %v789
      %v791 = vlaneseq
      %v792 = vshrl.u32 %v791, 7
      %v793 = vsub.s32 %v790, %v792
      %v794 = vrot.slane %v786, %v793
      %796 = vset.pattern.permute.xlu0 0
      %797 = vperm.xlu0 %796, %v422
      %v798 = vpop.permute.xlu0 %797
      %v801 = vunpack.c.l.s4 839922192
      %v802 = vunpack.c.0.s8 %v801
      %v803 = vlaneseq
      %v804 = vshrl.u32 %v803, 7
      %v805 = vsub.s32 %v802, %v804
      %v806 = vrot.slane %v798, %v805
      %v809 = vunpack.c.l.s4 1966171168
      %v810 = vunpack.c.0.s8 %v809
      %v811 = vlaneseq
      %v812 = vshrl.u32 %v811, 7
      %v813 = vsub.s32 %v810, %v812
      %v814 = vrot.slane %v381, %v813
      %v815 = vcombine.high %v814, %v814
      %v817 = vunpack.c.l.s4 1966171168
      %v818 = vunpack.c.0.s8 %v817
      %v819 = vlaneseq
      %v820 = vshrl.u32 %v819, 7
      %v821 = vsub.s32 %v818, %v820
      %v822 = vrot.slane %v814, %v821
      %v824 = vunpack.c.l.s4 1966171168
      %v825 = vunpack.c.0.s8 %v824
      %v826 = vlaneseq
      %v827 = vshrl.u32 %v826, 7
      %v828 = vsub.s32 %v825, %v827
      %v829 = vrot.slane %v815, %v828
      %v831 = vpack.i.b16 %v822, %v822
      %v833 = vlaneseq
      %v834 = vshrl.u32 %v833, 7
      %v835 = vsub.s32 0, %v834
      %v836 = vrot.slane %v831, %v835
      %v838 = vpack.i.b16 %v829, %v829
      %v840 = vlaneseq
      %v841 = vshrl.u32 %v840, 7
      %v842 = vsub.s32 0, %v841
      %v843 = vrot.slane %v838, %v842
      %v846 = vunpack.c.l.b16 %v836
      %v847 = vunpack.c.l.b16 %v843
      %v848 = vpack.c.b16 %v847, %v846
      %v850 = vmul.bf16 %v434, %v848
      %v851 = vmul.bf16 %v446, %v848
      %v852 = vmul.bf16 %v458, %v848
      %v853 = vmul.bf16 %v470, %v848
      %v854 = vmul.bf16 %v482, %v848
      %v855 = vmul.bf16 %v494, %v848
      %v856 = vmul.bf16 %v506, %v848
      %v857 = vmul.bf16 %v518, %v848
      %v858 = vmul.bf16 %v530, %v848
      %v859 = vmul.bf16 %v542, %v848
      %v860 = vmul.bf16 %v554, %v848
      %v861 = vmul.bf16 %v566, %v848
      %v862 = vmul.bf16 %v578, %v848
      %v863 = vmul.bf16 %v590, %v848
      %v864 = vmul.bf16 %v602, %v848
      %v865 = vmul.bf16 %v614, %v848
      %v866 = vmul.bf16 %v626, %v848
      %v867 = vmul.bf16 %v638, %v848
      %v868 = vmul.bf16 %v650, %v848
      %v869 = vmul.bf16 %v662, %v848
      %v870 = vmul.bf16 %v674, %v848
      %v871 = vmul.bf16 %v686, %v848
      %v872 = vmul.bf16 %v698, %v848
      %v873 = vmul.bf16 %v710, %v848
      %v874 = vmul.bf16 %v722, %v848
      %v875 = vmul.bf16 %v734, %v848
      %v876 = vmul.bf16 %v746, %v848
      %v877 = vmul.bf16 %v758, %v848
      %v878 = vmul.bf16 %v770, %v848
      %v879 = vmul.bf16 %v782, %v848
      %v880 = vmul.bf16 %v794, %v848
      %v881 = vmul.bf16 %v806, %v848
      %883 = vset.pattern.permute.xlu0 0
      %884 = vperm.xlu0 %883, %v349
      %v885 = vpop.permute.xlu0 %884
      %v888 = vunpack.c.l.s4 839922192
      %v889 = vunpack.c.0.s8 %v888
      %v890 = vlaneseq
      %v891 = vshrl.u32 %v890, 7
      %v892 = vsub.s32 %v889, %v891
      %v893 = vrot.slane %v885, %v892
      %895 = vset.pattern.permute.xlu0 0
      %896 = vperm.xlu0 %895, %v350
      %v897 = vpop.permute.xlu0 %896
      %v900 = vunpack.c.l.s4 839922192
      %v901 = vunpack.c.0.s8 %v900
      %v902 = vlaneseq
      %v903 = vshrl.u32 %v902, 7
      %v904 = vsub.s32 %v901, %v903
      %v905 = vrot.slane %v897, %v904
      %907 = vset.pattern.permute.xlu0 0
      %908 = vperm.xlu0 %907, %v351
      %v909 = vpop.permute.xlu0 %908
      %v912 = vunpack.c.l.s4 839922192
      %v913 = vunpack.c.0.s8 %v912
      %v914 = vlaneseq
      %v915 = vshrl.u32 %v914, 7
      %v916 = vsub.s32 %v913, %v915
      %v917 = vrot.slane %v909, %v916
      %919 = vset.pattern.permute.xlu0 0
      %920 = vperm.xlu0 %919, %v352
      %v921 = vpop.permute.xlu0 %920
      %v924 = vunpack.c.l.s4 839922192
      %v925 = vunpack.c.0.s8 %v924
      %v926 = vlaneseq
      %v927 = vshrl.u32 %v926, 7
      %v928 = vsub.s32 %v925, %v927
      %v929 = vrot.slane %v921, %v928
      %931 = vset.pattern.permute.xlu0 0
      %932 = vperm.xlu0 %931, %v353
      %v933 = vpop.permute.xlu0 %932
      %v936 = vunpack.c.l.s4 839922192
      %v937 = vunpack.c.0.s8 %v936
      %v938 = vlaneseq
      %v939 = vshrl.u32 %v938, 7
      %v940 = vsub.s32 %v937, %v939
      %v941 = vrot.slane %v933, %v940
      %943 = vset.pattern.permute.xlu0 0
      %944 = vperm.xlu0 %943, %v354
      %v945 = vpop.permute.xlu0 %944
      %v948 = vunpack.c.l.s4 839922192
      %v949 = vunpack.c.0.s8 %v948
      %v950 = vlaneseq
      %v951 = vshrl.u32 %v950, 7
      %v952 = vsub.s32 %v949, %v951
      %v953 = vrot.slane %v945, %v952
      %955 = vset.pattern.permute.xlu0 0
      %956 = vperm.xlu0 %955, %v355
      %v957 = vpop.permute.xlu0 %956
      %v960 = vunpack.c.l.s4 839922192
      %v961 = vunpack.c.0.s8 %v960
      %v962 = vlaneseq
      %v963 = vshrl.u32 %v962, 7
      %v964 = vsub.s32 %v961, %v963
      %v965 = vrot.slane %v957, %v964
      %967 = vset.pattern.permute.xlu0 0
      %968 = vperm.xlu0 %967, %v356
      %v969 = vpop.permute.xlu0 %968
      %v972 = vunpack.c.l.s4 839922192
      %v973 = vunpack.c.0.s8 %v972
      %v974 = vlaneseq
      %v975 = vshrl.u32 %v974, 7
      %v976 = vsub.s32 %v973, %v975
      %v977 = vrot.slane %v969, %v976
      %979 = vset.pattern.permute.xlu0 0
      %980 = vperm.xlu0 %979, %v357
      %v981 = vpop.permute.xlu0 %980
      %v984 = vunpack.c.l.s4 839922192
      %v985 = vunpack.c.0.s8 %v984
      %v986 = vlaneseq
      %v987 = vshrl.u32 %v986, 7
      %v988 = vsub.s32 %v985, %v987
      %v989 = vrot.slane %v981, %v988
      %991 = vset.pattern.permute.xlu0 0
      %992 = vperm.xlu0 %991, %v358
      %v993 = vpop.permute.xlu0 %992
      %v996 = vunpack.c.l.s4 839922192
      %v997 = vunpack.c.0.s8 %v996
      %v998 = vlaneseq
      %v999 = vshrl.u32 %v998, 7
      %v1000 = vsub.s32 %v997, %v999
      %v1001 = vrot.slane %v993, %v1000
      %1003 = vset.pattern.permute.xlu0 0
      %1004 = vperm.xlu0 %1003, %v359
      %v1005 = vpop.permute.xlu0 %1004
      %v1008 = vunpack.c.l.s4 839922192
      %v1009 = vunpack.c.0.s8 %v1008
      %v1010 = vlaneseq
      %v1011 = vshrl.u32 %v1010, 7
      %v1012 = vsub.s32 %v1009, %v1011
      %v1013 = vrot.slane %v1005, %v1012
      %1015 = vset.pattern.permute.xlu0 0
      %1016 = vperm.xlu0 %1015, %v360
      %v1017 = vpop.permute.xlu0 %1016
      %v1020 = vunpack.c.l.s4 839922192
      %v1021 = vunpack.c.0.s8 %v1020
      %v1022 = vlaneseq
      %v1023 = vshrl.u32 %v1022, 7
      %v1024 = vsub.s32 %v1021, %v1023
      %v1025 = vrot.slane %v1017, %v1024
      %1027 = vset.pattern.permute.xlu0 0
      %1028 = vperm.xlu0 %1027, %v361
      %v1029 = vpop.permute.xlu0 %1028
      %v1032 = vunpack.c.l.s4 839922192
      %v1033 = vunpack.c.0.s8 %v1032
      %v1034 = vlaneseq
      %v1035 = vshrl.u32 %v1034, 7
      %v1036 = vsub.s32 %v1033, %v1035
      %v1037 = vrot.slane %v1029, %v1036
      %1039 = vset.pattern.permute.xlu0 0
      %1040 = vperm.xlu0 %1039, %v362
      %v1041 = vpop.permute.xlu0 %1040
      %v1044 = vunpack.c.l.s4 839922192
      %v1045 = vunpack.c.0.s8 %v1044
      %v1046 = vlaneseq
      %v1047 = vshrl.u32 %v1046, 7
      %v1048 = vsub.s32 %v1045, %v1047
      %v1049 = vrot.slane %v1041, %v1048
      %1051 = vset.pattern.permute.xlu0 0
      %1052 = vperm.xlu0 %1051, %v363
      %v1053 = vpop.permute.xlu0 %1052
      %v1056 = vunpack.c.l.s4 839922192
      %v1057 = vunpack.c.0.s8 %v1056
      %v1058 = vlaneseq
      %v1059 = vshrl.u32 %v1058, 7
      %v1060 = vsub.s32 %v1057, %v1059
      %v1061 = vrot.slane %v1053, %v1060
      %1063 = vset.pattern.permute.xlu0 0
      %1064 = vperm.xlu0 %1063, %v364
      %v1065 = vpop.permute.xlu0 %1064
      %v1068 = vunpack.c.l.s4 839922192
      %v1069 = vunpack.c.0.s8 %v1068
      %v1070 = vlaneseq
      %v1071 = vshrl.u32 %v1070, 7
      %v1072 = vsub.s32 %v1069, %v1071
      %v1073 = vrot.slane %v1065, %v1072
      %1075 = vset.pattern.permute.xlu0 0
      %1076 = vperm.xlu0 %1075, %v365
      %v1077 = vpop.permute.xlu0 %1076
      %v1080 = vunpack.c.l.s4 839922192
      %v1081 = vunpack.c.0.s8 %v1080
      %v1082 = vlaneseq
      %v1083 = vshrl.u32 %v1082, 7
      %v1084 = vsub.s32 %v1081, %v1083
      %v1085 = vrot.slane %v1077, %v1084
      %1087 = vset.pattern.permute.xlu0 0
      %1088 = vperm.xlu0 %1087, %v366
      %v1089 = vpop.permute.xlu0 %1088
      %v1092 = vunpack.c.l.s4 839922192
      %v1093 = vunpack.c.0.s8 %v1092
      %v1094 = vlaneseq
      %v1095 = vshrl.u32 %v1094, 7
      %v1096 = vsub.s32 %v1093, %v1095
      %v1097 = vrot.slane %v1089, %v1096
      %1099 = vset.pattern.permute.xlu0 0
      %1100 = vperm.xlu0 %1099, %v367
      %v1101 = vpop.permute.xlu0 %1100
      %v1104 = vunpack.c.l.s4 839922192
      %v1105 = vunpack.c.0.s8 %v1104
      %v1106 = vlaneseq
      %v1107 = vshrl.u32 %v1106, 7
      %v1108 = vsub.s32 %v1105, %v1107
      %v1109 = vrot.slane %v1101, %v1108
      %1111 = vset.pattern.permute.xlu0 0
      %1112 = vperm.xlu0 %1111, %v368
      %v1113 = vpop.permute.xlu0 %1112
      %v1116 = vunpack.c.l.s4 839922192
      %v1117 = vunpack.c.0.s8 %v1116
      %v1118 = vlaneseq
      %v1119 = vshrl.u32 %v1118, 7
      %v1120 = vsub.s32 %v1117, %v1119
      %v1121 = vrot.slane %v1113, %v1120
      %1123 = vset.pattern.permute.xlu0 0
      %1124 = vperm.xlu0 %1123, %v369
      %v1125 = vpop.permute.xlu0 %1124
      %v1128 = vunpack.c.l.s4 839922192
      %v1129 = vunpack.c.0.s8 %v1128
      %v1130 = vlaneseq
      %v1131 = vshrl.u32 %v1130, 7
      %v1132 = vsub.s32 %v1129, %v1131
      %v1133 = vrot.slane %v1125, %v1132
      %1135 = vset.pattern.permute.xlu0 0
      %1136 = vperm.xlu0 %1135, %v370
      %v1137 = vpop.permute.xlu0 %1136
      %v1140 = vunpack.c.l.s4 839922192
      %v1141 = vunpack.c.0.s8 %v1140
      %v1142 = vlaneseq
      %v1143 = vshrl.u32 %v1142, 7
      %v1144 = vsub.s32 %v1141, %v1143
      %v1145 = vrot.slane %v1137, %v1144
      %1147 = vset.pattern.permute.xlu0 0
      %1148 = vperm.xlu0 %1147, %v371
      %v1149 = vpop.permute.xlu0 %1148
      %v1152 = vunpack.c.l.s4 839922192
      %v1153 = vunpack.c.0.s8 %v1152
      %v1154 = vlaneseq
      %v1155 = vshrl.u32 %v1154, 7
      %v1156 = vsub.s32 %v1153, %v1155
      %v1157 = vrot.slane %v1149, %v1156
      %1159 = vset.pattern.permute.xlu0 0
      %1160 = vperm.xlu0 %1159, %v372
      %v1161 = vpop.permute.xlu0 %1160
      %v1164 = vunpack.c.l.s4 839922192
      %v1165 = vunpack.c.0.s8 %v1164
      %v1166 = vlaneseq
      %v1167 = vshrl.u32 %v1166, 7
      %v1168 = vsub.s32 %v1165, %v1167
      %v1169 = vrot.slane %v1161, %v1168
      %1171 = vset.pattern.permute.xlu0 0
      %1172 = vperm.xlu0 %1171, %v373
      %v1173 = vpop.permute.xlu0 %1172
      %v1176 = vunpack.c.l.s4 839922192
      %v1177 = vunpack.c.0.s8 %v1176
      %v1178 = vlaneseq
      %v1179 = vshrl.u32 %v1178, 7
      %v1180 = vsub.s32 %v1177, %v1179
      %v1181 = vrot.slane %v1173, %v1180
      %1183 = vset.pattern.permute.xlu0 0
      %1184 = vperm.xlu0 %1183, %v374
      %v1185 = vpop.permute.xlu0 %1184
      %v1188 = vunpack.c.l.s4 839922192
      %v1189 = vunpack.c.0.s8 %v1188
      %v1190 = vlaneseq
      %v1191 = vshrl.u32 %v1190, 7
      %v1192 = vsub.s32 %v1189, %v1191
      %v1193 = vrot.slane %v1185, %v1192
      %1195 = vset.pattern.permute.xlu0 0
      %1196 = vperm.xlu0 %1195, %v375
      %v1197 = vpop.permute.xlu0 %1196
      %v1200 = vunpack.c.l.s4 839922192
      %v1201 = vunpack.c.0.s8 %v1200
      %v1202 = vlaneseq
      %v1203 = vshrl.u32 %v1202, 7
      %v1204 = vsub.s32 %v1201, %v1203
      %v1205 = vrot.slane %v1197, %v1204
      %1207 = vset.pattern.permute.xlu0 0
      %1208 = vperm.xlu0 %1207, %v376
      %v1209 = vpop.permute.xlu0 %1208
      %v1212 = vunpack.c.l.s4 839922192
      %v1213 = vunpack.c.0.s8 %v1212
      %v1214 = vlaneseq
      %v1215 = vshrl.u32 %v1214, 7
      %v1216 = vsub.s32 %v1213, %v1215
      %v1217 = vrot.slane %v1209, %v1216
      %1219 = vset.pattern.permute.xlu0 0
      %1220 = vperm.xlu0 %1219, %v377
      %v1221 = vpop.permute.xlu0 %1220
      %v1224 = vunpack.c.l.s4 839922192
      %v1225 = vunpack.c.0.s8 %v1224
      %v1226 = vlaneseq
      %v1227 = vshrl.u32 %v1226, 7
      %v1228 = vsub.s32 %v1225, %v1227
      %v1229 = vrot.slane %v1221, %v1228
      %1231 = vset.pattern.permute.xlu0 0
      %1232 = vperm.xlu0 %1231, %v378
      %v1233 = vpop.permute.xlu0 %1232
      %v1236 = vunpack.c.l.s4 839922192
      %v1237 = vunpack.c.0.s8 %v1236
      %v1238 = vlaneseq
      %v1239 = vshrl.u32 %v1238, 7
      %v1240 = vsub.s32 %v1237, %v1239
      %v1241 = vrot.slane %v1233, %v1240
      %1243 = vset.pattern.permute.xlu0 0
      %1244 = vperm.xlu0 %1243, %v379
      %v1245 = vpop.permute.xlu0 %1244
      %v1248 = vunpack.c.l.s4 839922192
      %v1249 = vunpack.c.0.s8 %v1248
      %v1250 = vlaneseq
      %v1251 = vshrl.u32 %v1250, 7
      %v1252 = vsub.s32 %v1249, %v1251
      %v1253 = vrot.slane %v1245, %v1252
      %1255 = vset.pattern.permute.xlu0 0
      %1256 = vperm.xlu0 %1255, %v380
      %v1257 = vpop.permute.xlu0 %1256
      %v1260 = vunpack.c.l.s4 839922192
      %v1261 = vunpack.c.0.s8 %v1260
      %v1262 = vlaneseq
      %v1263 = vshrl.u32 %v1262, 7
      %v1264 = vsub.s32 %v1261, %v1263
      %v1265 = vrot.slane %v1257, %v1264
      %v1266 = vadd.bf16 %v893, %v850
      %v1267 = vadd.bf16 %v905, %v851
      %v1268 = vadd.bf16 %v917, %v852
      %v1269 = vadd.bf16 %v929, %v853
      %v1270 = vadd.bf16 %v941, %v854
      %v1271 = vadd.bf16 %v953, %v855
      %v1272 = vadd.bf16 %v965, %v856
      %v1273 = vadd.bf16 %v977, %v857
      %v1274 = vadd.bf16 %v989, %v858
      %v1275 = vadd.bf16 %v1001, %v859
      %v1276 = vadd.bf16 %v1013, %v860
      %v1277 = vadd.bf16 %v1025, %v861
      %v1278 = vadd.bf16 %v1037, %v862
      %v1279 = vadd.bf16 %v1049, %v863
      %v1280 = vadd.bf16 %v1061, %v864
      %v1281 = vadd.bf16 %v1073, %v865
      %v1282 = vadd.bf16 %v1085, %v866
      %v1283 = vadd.bf16 %v1097, %v867
      %v1284 = vadd.bf16 %v1109, %v868
      %v1285 = vadd.bf16 %v1121, %v869
      %v1286 = vadd.bf16 %v1133, %v870
      %v1287 = vadd.bf16 %v1145, %v871
      %v1288 = vadd.bf16 %v1157, %v872
      %v1289 = vadd.bf16 %v1169, %v873
      %v1290 = vadd.bf16 %v1181, %v874
      %v1291 = vadd.bf16 %v1193, %v875
      %v1292 = vadd.bf16 %v1205, %v876
      %v1293 = vadd.bf16 %v1217, %v877
      %v1294 = vadd.bf16 %v1229, %v878
      %v1295 = vadd.bf16 %v1241, %v879
      %v1296 = vadd.bf16 %v1253, %v880
      %v1297 = vadd.bf16 %v1265, %v881
      %v1298 = vld [vmem:[%s2] sm:$0xf]
      %v1299 = vld [vmem:[%s2 + $0x4] sm:$0xf]
      %v1300 = vld [vmem:[%s2 + $0x8] sm:$0xf]
      %v1301 = vld [vmem:[%s2 + $0xc] sm:$0xf]
      %v1302 = vld [vmem:[%s2 + $0x10] sm:$0xf]
      %v1303 = vld [vmem:[%s2 + $0x14] sm:$0xf]
      %v1304 = vld [vmem:[%s2 + $0x18] sm:$0xf]
      %v1305 = vld [vmem:[%s2 + $0x1c] sm:$0xf]
      %v1306 = vld [vmem:[%s2 + $0x20] sm:$0xf]
      %v1307 = vld [vmem:[%s2 + $0x24] sm:$0xf]
      %v1308 = vld [vmem:[%s2 + $0x28] sm:$0xf]
      %v1309 = vld [vmem:[%s2 + $0x2c] sm:$0xf]
      %v1310 = vld [vmem:[%s2 + $0x30] sm:$0xf]
      %v1311 = vld [vmem:[%s2 + $0x34] sm:$0xf]
      %v1312 = vld [vmem:[%s2 + $0x38] sm:$0xf]
      %v1313 = vld [vmem:[%s2 + $0x3c] sm:$0xf]
      %v1314 = vld [vmem:[%s2 + $0x40] sm:$0xf]
      %v1315 = vld [vmem:[%s2 + $0x44] sm:$0xf]
      %v1316 = vld [vmem:[%s2 + $0x48] sm:$0xf]
      %v1317 = vld [vmem:[%s2 + $0x4c] sm:$0xf]
      %v1318 = vld [vmem:[%s2 + $0x50] sm:$0xf]
      %v1319 = vld [vmem:[%s2 + $0x54] sm:$0xf]
      %v1320 = vld [vmem:[%s2 + $0x58] sm:$0xf]
      %v1321 = vld [vmem:[%s2 + $0x5c] sm:$0xf]
      %v1322 = vld [vmem:[%s2 + $0x60] sm:$0xf]
      %v1323 = vld [vmem:[%s2 + $0x64] sm:$0xf]
      %v1324 = vld [vmem:[%s2 + $0x68] sm:$0xf]
      %v1325 = vld [vmem:[%s2 + $0x6c] sm:$0xf]
      %v1326 = vld [vmem:[%s2 + $0x70] sm:$0xf]
      %v1327 = vld [vmem:[%s2 + $0x74] sm:$0xf]
      %v1328 = vld [vmem:[%s2 + $0x78] sm:$0xf]
      %v1329 = vld [vmem:[%s2 + $0x7c] sm:$0xf]
      %1331 = vset.pattern.permute.xlu0 1
      %1332 = vperm.xlu0 %1331, %v1298
      %v1333 = vpop.permute.xlu0 %1332
      %v1336 = vunpack.c.l.s4 839922192
      %v1337 = vunpack.c.0.s8 %v1336
      %v1338 = vlaneseq
      %v1339 = vshrl.u32 %v1338, 7
      %v1340 = vsub.s32 %v1337, %v1339
      %v1341 = vrot.slane %v1333, %v1340
      %1343 = vset.pattern.permute.xlu0 1
      %1344 = vperm.xlu0 %1343, %v1299
      %v1345 = vpop.permute.xlu0 %1344
      %v1348 = vunpack.c.l.s4 839922192
      %v1349 = vunpack.c.0.s8 %v1348
      %v1350 = vlaneseq
      %v1351 = vshrl.u32 %v1350, 7
      %v1352 = vsub.s32 %v1349, %v1351
      %v1353 = vrot.slane %v1345, %v1352
      %1355 = vset.pattern.permute.xlu0 1
      %1356 = vperm.xlu0 %1355, %v1300
      %v1357 = vpop.permute.xlu0 %1356
      %v1360 = vunpack.c.l.s4 839922192
      %v1361 = vunpack.c.0.s8 %v1360
      %v1362 = vlaneseq
      %v1363 = vshrl.u32 %v1362, 7
      %v1364 = vsub.s32 %v1361, %v1363
      %v1365 = vrot.slane %v1357, %v1364
      %1367 = vset.pattern.permute.xlu0 1
      %1368 = vperm.xlu0 %1367, %v1301
      %v1369 = vpop.permute.xlu0 %1368
      %v1372 = vunpack.c.l.s4 839922192
      %v1373 = vunpack.c.0.s8 %v1372
      %v1374 = vlaneseq
      %v1375 = vshrl.u32 %v1374, 7
      %v1376 = vsub.s32 %v1373, %v1375
      %v1377 = vrot.slane %v1369, %v1376
      %1379 = vset.pattern.permute.xlu0 1
      %1380 = vperm.xlu0 %1379, %v1302
      %v1381 = vpop.permute.xlu0 %1380
      %v1384 = vunpack.c.l.s4 839922192
      %v1385 = vunpack.c.0.s8 %v1384
      %v1386 = vlaneseq
      %v1387 = vshrl.u32 %v1386, 7
      %v1388 = vsub.s32 %v1385, %v1387
      %v1389 = vrot.slane %v1381, %v1388
      %1391 = vset.pattern.permute.xlu0 1
      %1392 = vperm.xlu0 %1391, %v1303
      %v1393 = vpop.permute.xlu0 %1392
      %v1396 = vunpack.c.l.s4 839922192
      %v1397 = vunpack.c.0.s8 %v1396
      %v1398 = vlaneseq
      %v1399 = vshrl.u32 %v1398, 7
      %v1400 = vsub.s32 %v1397, %v1399
      %v1401 = vrot.slane %v1393, %v1400
      %1403 = vset.pattern.permute.xlu0 1
      %1404 = vperm.xlu0 %1403, %v1304
      %v1405 = vpop.permute.xlu0 %1404
      %v1408 = vunpack.c.l.s4 839922192
      %v1409 = vunpack.c.0.s8 %v1408
      %v1410 = vlaneseq
      %v1411 = vshrl.u32 %v1410, 7
      %v1412 = vsub.s32 %v1409, %v1411
      %v1413 = vrot.slane %v1405, %v1412
      %1415 = vset.pattern.permute.xlu0 1
      %1416 = vperm.xlu0 %1415, %v1305
      %v1417 = vpop.permute.xlu0 %1416
      %v1420 = vunpack.c.l.s4 839922192
      %v1421 = vunpack.c.0.s8 %v1420
      %v1422 = vlaneseq
      %v1423 = vshrl.u32 %v1422, 7
      %v1424 = vsub.s32 %v1421, %v1423
      %v1425 = vrot.slane %v1417, %v1424
      %1427 = vset.pattern.permute.xlu0 1
      %1428 = vperm.xlu0 %1427, %v1306
      %v1429 = vpop.permute.xlu0 %1428
      %v1432 = vunpack.c.l.s4 839922192
      %v1433 = vunpack.c.0.s8 %v1432
      %v1434 = vlaneseq
      %v1435 = vshrl.u32 %v1434, 7
      %v1436 = vsub.s32 %v1433, %v1435
      %v1437 = vrot.slane %v1429, %v1436
      %1439 = vset.pattern.permute.xlu0 1
      %1440 = vperm.xlu0 %1439, %v1307
      %v1441 = vpop.permute.xlu0 %1440
      %v1444 = vunpack.c.l.s4 839922192
      %v1445 = vunpack.c.0.s8 %v1444
      %v1446 = vlaneseq
      %v1447 = vshrl.u32 %v1446, 7
      %v1448 = vsub.s32 %v1445, %v1447
      %v1449 = vrot.slane %v1441, %v1448
      %1451 = vset.pattern.permute.xlu0 1
      %1452 = vperm.xlu0 %1451, %v1308
      %v1453 = vpop.permute.xlu0 %1452
      %v1456 = vunpack.c.l.s4 839922192
      %v1457 = vunpack.c.0.s8 %v1456
      %v1458 = vlaneseq
      %v1459 = vshrl.u32 %v1458, 7
      %v1460 = vsub.s32 %v1457, %v1459
      %v1461 = vrot.slane %v1453, %v1460
      %1463 = vset.pattern.permute.xlu0 1
      %1464 = vperm.xlu0 %1463, %v1309
      %v1465 = vpop.permute.xlu0 %1464
      %v1468 = vunpack.c.l.s4 839922192
      %v1469 = vunpack.c.0.s8 %v1468
      %v1470 = vlaneseq
      %v1471 = vshrl.u32 %v1470, 7
      %v1472 = vsub.s32 %v1469, %v1471
      %v1473 = vrot.slane %v1465, %v1472
      %1475 = vset.pattern.permute.xlu0 1
      %1476 = vperm.xlu0 %1475, %v1310
      %v1477 = vpop.permute.xlu0 %1476
      %v1480 = vunpack.c.l.s4 839922192
      %v1481 = vunpack.c.0.s8 %v1480
      %v1482 = vlaneseq
      %v1483 = vshrl.u32 %v1482, 7
      %v1484 = vsub.s32 %v1481, %v1483
      %v1485 = vrot.slane %v1477, %v1484
      %1487 = vset.pattern.permute.xlu0 1
      %1488 = vperm.xlu0 %1487, %v1311
      %v1489 = vpop.permute.xlu0 %1488
      %v1492 = vunpack.c.l.s4 839922192
      %v1493 = vunpack.c.0.s8 %v1492
      %v1494 = vlaneseq
      %v1495 = vshrl.u32 %v1494, 7
      %v1496 = vsub.s32 %v1493, %v1495
      %v1497 = vrot.slane %v1489, %v1496
      %1499 = vset.pattern.permute.xlu0 1
      %1500 = vperm.xlu0 %1499, %v1312
      %v1501 = vpop.permute.xlu0 %1500
      %v1504 = vunpack.c.l.s4 839922192
      %v1505 = vunpack.c.0.s8 %v1504
      %v1506 = vlaneseq
      %v1507 = vshrl.u32 %v1506, 7
      %v1508 = vsub.s32 %v1505, %v1507
      %v1509 = vrot.slane %v1501, %v1508
      %1511 = vset.pattern.permute.xlu0 1
      %1512 = vperm.xlu0 %1511, %v1313
      %v1513 = vpop.permute.xlu0 %1512
      %v1516 = vunpack.c.l.s4 839922192
      %v1517 = vunpack.c.0.s8 %v1516
      %v1518 = vlaneseq
      %v1519 = vshrl.u32 %v1518, 7
      %v1520 = vsub.s32 %v1517, %v1519
      %v1521 = vrot.slane %v1513, %v1520
      %1523 = vset.pattern.permute.xlu0 1
      %1524 = vperm.xlu0 %1523, %v1314
      %v1525 = vpop.permute.xlu0 %1524
      %v1528 = vunpack.c.l.s4 839922192
      %v1529 = vunpack.c.0.s8 %v1528
      %v1530 = vlaneseq
      %v1531 = vshrl.u32 %v1530, 7
      %v1532 = vsub.s32 %v1529, %v1531
      %v1533 = vrot.slane %v1525, %v1532
      %1535 = vset.pattern.permute.xlu0 1
      %1536 = vperm.xlu0 %1535, %v1315
      %v1537 = vpop.permute.xlu0 %1536
      %v1540 = vunpack.c.l.s4 839922192
      %v1541 = vunpack.c.0.s8 %v1540
      %v1542 = vlaneseq
      %v1543 = vshrl.u32 %v1542, 7
      %v1544 = vsub.s32 %v1541, %v1543
      %v1545 = vrot.slane %v1537, %v1544
      %1547 = vset.pattern.permute.xlu0 1
      %1548 = vperm.xlu0 %1547, %v1316
      %v1549 = vpop.permute.xlu0 %1548
      %v1552 = vunpack.c.l.s4 839922192
      %v1553 = vunpack.c.0.s8 %v1552
      %v1554 = vlaneseq
      %v1555 = vshrl.u32 %v1554, 7
      %v1556 = vsub.s32 %v1553, %v1555
      %v1557 = vrot.slane %v1549, %v1556
      %1559 = vset.pattern.permute.xlu0 1
      %1560 = vperm.xlu0 %1559, %v1317
      %v1561 = vpop.permute.xlu0 %1560
      %v1564 = vunpack.c.l.s4 839922192
      %v1565 = vunpack.c.0.s8 %v1564
      %v1566 = vlaneseq
      %v1567 = vshrl.u32 %v1566, 7
      %v1568 = vsub.s32 %v1565, %v1567
      %v1569 = vrot.slane %v1561, %v1568
      %1571 = vset.pattern.permute.xlu0 1
      %1572 = vperm.xlu0 %1571, %v1318
      %v1573 = vpop.permute.xlu0 %1572
      %v1576 = vunpack.c.l.s4 839922192
      %v1577 = vunpack.c.0.s8 %v1576
      %v1578 = vlaneseq
      %v1579 = vshrl.u32 %v1578, 7
      %v1580 = vsub.s32 %v1577, %v1579
      %v1581 = vrot.slane %v1573, %v1580
      %1583 = vset.pattern.permute.xlu0 1
      %1584 = vperm.xlu0 %1583, %v1319
      %v1585 = vpop.permute.xlu0 %1584
      %v1588 = vunpack.c.l.s4 839922192
      %v1589 = vunpack.c.0.s8 %v1588
      %v1590 = vlaneseq
      %v1591 = vshrl.u32 %v1590, 7
      %v1592 = vsub.s32 %v1589, %v1591
      %v1593 = vrot.slane %v1585, %v1592
      %1595 = vset.pattern.permute.xlu0 1
      %1596 = vperm.xlu0 %1595, %v1320
      %v1597 = vpop.permute.xlu0 %1596
      %v1600 = vunpack.c.l.s4 839922192
      %v1601 = vunpack.c.0.s8 %v1600
      %v1602 = vlaneseq
      %v1603 = vshrl.u32 %v1602, 7
      %v1604 = vsub.s32 %v1601, %v1603
      %v1605 = vrot.slane %v1597, %v1604
      %1607 = vset.pattern.permute.xlu0 1
      %1608 = vperm.xlu0 %1607, %v1321
      %v1609 = vpop.permute.xlu0 %1608
      %v1612 = vunpack.c.l.s4 839922192
      %v1613 = vunpack.c.0.s8 %v1612
      %v1614 = vlaneseq
      %v1615 = vshrl.u32 %v1614, 7
      %v1616 = vsub.s32 %v1613, %v1615
      %v1617 = vrot.slane %v1609, %v1616
      %1619 = vset.pattern.permute.xlu0 1
      %1620 = vperm.xlu0 %1619, %v1322
      %v1621 = vpop.permute.xlu0 %1620
      %v1624 = vunpack.c.l.s4 839922192
      %v1625 = vunpack.c.0.s8 %v1624
      %v1626 = vlaneseq
      %v1627 = vshrl.u32 %v1626, 7
      %v1628 = vsub.s32 %v1625, %v1627
      %v1629 = vrot.slane %v1621, %v1628
      %1631 = vset.pattern.permute.xlu0 1
      %1632 = vperm.xlu0 %1631, %v1323
      %v1633 = vpop.permute.xlu0 %1632
      %v1636 = vunpack.c.l.s4 839922192
      %v1637 = vunpack.c.0.s8 %v1636
      %v1638 = vlaneseq
      %v1639 = vshrl.u32 %v1638, 7
      %v1640 = vsub.s32 %v1637, %v1639
      %v1641 = vrot.slane %v1633, %v1640
      %1643 = vset.pattern.permute.xlu0 1
      %1644 = vperm.xlu0 %1643, %v1324
      %v1645 = vpop.permute.xlu0 %1644
      %v1648 = vunpack.c.l.s4 839922192
      %v1649 = vunpack.c.0.s8 %v1648
      %v1650 = vlaneseq
      %v1651 = vshrl.u32 %v1650, 7
      %v1652 = vsub.s32 %v1649, %v1651
      %v1653 = vrot.slane %v1645, %v1652
      %1655 = vset.pattern.permute.xlu0 1
      %1656 = vperm.xlu0 %1655, %v1325
      %v1657 = vpop.permute.xlu0 %1656
      %v1660 = vunpack.c.l.s4 839922192
      %v1661 = vunpack.c.0.s8 %v1660
      %v1662 = vlaneseq
      %v1663 = vshrl.u32 %v1662, 7
      %v1664 = vsub.s32 %v1661, %v1663
      %v1665 = vrot.slane %v1657, %v1664
      %1667 = vset.pattern.permute.xlu0 1
      %1668 = vperm.xlu0 %1667, %v1326
      %v1669 = vpop.permute.xlu0 %1668
      %v1672 = vunpack.c.l.s4 839922192
      %v1673 = vunpack.c.0.s8 %v1672
      %v1674 = vlaneseq
      %v1675 = vshrl.u32 %v1674, 7
      %v1676 = vsub.s32 %v1673, %v1675
      %v1677 = vrot.slane %v1669, %v1676
      %1679 = vset.pattern.permute.xlu0 1
      %1680 = vperm.xlu0 %1679, %v1327
      %v1681 = vpop.permute.xlu0 %1680
      %v1684 = vunpack.c.l.s4 839922192
      %v1685 = vunpack.c.0.s8 %v1684
      %v1686 = vlaneseq
      %v1687 = vshrl.u32 %v1686, 7
      %v1688 = vsub.s32 %v1685, %v1687
      %v1689 = vrot.slane %v1681, %v1688
      %1691 = vset.pattern.permute.xlu0 1
      %1692 = vperm.xlu0 %1691, %v1328
      %v1693 = vpop.permute.xlu0 %1692
      %v1696 = vunpack.c.l.s4 839922192
      %v1697 = vunpack.c.0.s8 %v1696
      %v1698 = vlaneseq
      %v1699 = vshrl.u32 %v1698, 7
      %v1700 = vsub.s32 %v1697, %v1699
      %v1701 = vrot.slane %v1693, %v1700
      %1703 = vset.pattern.permute.xlu0 1
      %1704 = vperm.xlu0 %1703, %v1329
      %v1705 = vpop.permute.xlu0 %1704
      %v1708 = vunpack.c.l.s4 839922192
      %v1709 = vunpack.c.0.s8 %v1708
      %v1710 = vlaneseq
      %v1711 = vshrl.u32 %v1710, 7
      %v1712 = vsub.s32 %v1709, %v1711
      %v1713 = vrot.slane %v1705, %v1712
      %v1714 = vshrl.u32 %v822, 16
      %v1715 = vpack.i.b16 %v1714, %v1714
      %v1717 = vlaneseq
      %v1718 = vshrl.u32 %v1717, 7
      %v1719 = vsub.s32 0, %v1718
      %v1720 = vrot.slane %v1715, %v1719
      %v1721 = vshrl.u32 %v829, 16
      %v1722 = vpack.i.b16 %v1721, %v1721
      %v1724 = vlaneseq
      %v1725 = vshrl.u32 %v1724, 7
      %v1726 = vsub.s32 0, %v1725
      %v1727 = vrot.slane %v1722, %v1726
      %v1730 = vunpack.c.l.b16 %v1720
      %v1731 = vunpack.c.l.b16 %v1727
      %v1732 = vpack.c.b16 %v1731, %v1730
      %v1734 = vmul.bf16 %v1341, %v1732
      %v1735 = vmul.bf16 %v1353, %v1732
      %v1736 = vmul.bf16 %v1365, %v1732
      %v1737 = vmul.bf16 %v1377, %v1732
      %v1738 = vmul.bf16 %v1389, %v1732
      %v1739 = vmul.bf16 %v1401, %v1732
      %v1740 = vmul.bf16 %v1413, %v1732
      %v1741 = vmul.bf16 %v1425, %v1732
      %v1742 = vmul.bf16 %v1437, %v1732
      %v1743 = vmul.bf16 %v1449, %v1732
      %v1744 = vmul.bf16 %v1461, %v1732
      %v1745 = vmul.bf16 %v1473, %v1732
      %v1746 = vmul.bf16 %v1485, %v1732
      %v1747 = vmul.bf16 %v1497, %v1732
      %v1748 = vmul.bf16 %v1509, %v1732
      %v1749 = vmul.bf16 %v1521, %v1732
      %v1750 = vmul.bf16 %v1533, %v1732
      %v1751 = vmul.bf16 %v1545, %v1732
      %v1752 = vmul.bf16 %v1557, %v1732
      %v1753 = vmul.bf16 %v1569, %v1732
      %v1754 = vmul.bf16 %v1581, %v1732
      %v1755 = vmul.bf16 %v1593, %v1732
      %v1756 = vmul.bf16 %v1605, %v1732
      %v1757 = vmul.bf16 %v1617, %v1732
      %v1758 = vmul.bf16 %v1629, %v1732
      %v1759 = vmul.bf16 %v1641, %v1732
      %v1760 = vmul.bf16 %v1653, %v1732
      %v1761 = vmul.bf16 %v1665, %v1732
      %v1762 = vmul.bf16 %v1677, %v1732
      %v1763 = vmul.bf16 %v1689, %v1732
      %v1764 = vmul.bf16 %v1701, %v1732
      %v1765 = vmul.bf16 %v1713, %v1732
      %v1766 = vadd.bf16 %v1266, %v1734
      %v1767 = vadd.bf16 %v1267, %v1735
      %v1768 = vadd.bf16 %v1268, %v1736
      %v1769 = vadd.bf16 %v1269, %v1737
      %v1770 = vadd.bf16 %v1270, %v1738
      %v1771 = vadd.bf16 %v1271, %v1739
      %v1772 = vadd.bf16 %v1272, %v1740
      %v1773 = vadd.bf16 %v1273, %v1741
      %v1774 = vadd.bf16 %v1274, %v1742
      %v1775 = vadd.bf16 %v1275, %v1743
      %v1776 = vadd.bf16 %v1276, %v1744
      %v1777 = vadd.bf16 %v1277, %v1745
      %v1778 = vadd.bf16 %v1278, %v1746
      %v1779 = vadd.bf16 %v1279, %v1747
      %v1780 = vadd.bf16 %v1280, %v1748
      %v1781 = vadd.bf16 %v1281, %v1749
      %v1782 = vadd.bf16 %v1282, %v1750
      %v1783 = vadd.bf16 %v1283, %v1751
      %v1784 = vadd.bf16 %v1284, %v1752
      %v1785 = vadd.bf16 %v1285, %v1753
      %v1786 = vadd.bf16 %v1286, %v1754
      %v1787 = vadd.bf16 %v1287, %v1755
      %v1788 = vadd.bf16 %v1288, %v1756
      %v1789 = vadd.bf16 %v1289, %v1757
      %v1790 = vadd.bf16 %v1290, %v1758
      %v1791 = vadd.bf16 %v1291, %v1759
      %v1792 = vadd.bf16 %v1292, %v1760
      %v1793 = vadd.bf16 %v1293, %v1761
      %v1794 = vadd.bf16 %v1294, %v1762
      %v1795 = vadd.bf16 %v1295, %v1763
      %v1796 = vadd.bf16 %v1296, %v1764
      %v1797 = vadd.bf16 %v1297, %v1765
      %v1798 = vmax.bf16 %v1766, 0
      %v1799 = vmax.bf16 %v1767, 0
      %v1800 = vmax.bf16 %v1768, 0
      %v1801 = vmax.bf16 %v1769, 0
      %v1802 = vmax.bf16 %v1770, 0
      %v1803 = vmax.bf16 %v1771, 0
      %v1804 = vmax.bf16 %v1772, 0
      %v1805 = vmax.bf16 %v1773, 0
      %v1806 = vmax.bf16 %v1774, 0
      %v1807 = vmax.bf16 %v1775, 0
      %v1808 = vmax.bf16 %v1776, 0
      %v1809 = vmax.bf16 %v1777, 0
      %v1810 = vmax.bf16 %v1778, 0
      %v1811 = vmax.bf16 %v1779, 0
      %v1812 = vmax.bf16 %v1780, 0
      %v1813 = vmax.bf16 %v1781, 0
      %v1814 = vmax.bf16 %v1782, 0
      %v1815 = vmax.bf16 %v1783, 0
      %v1816 = vmax.bf16 %v1784, 0
      %v1817 = vmax.bf16 %v1785, 0
      %v1818 = vmax.bf16 %v1786, 0
      %v1819 = vmax.bf16 %v1787, 0
      %v1820 = vmax.bf16 %v1788, 0
      %v1821 = vmax.bf16 %v1789, 0
      %v1822 = vmax.bf16 %v1790, 0
      %v1823 = vmax.bf16 %v1791, 0
      %v1824 = vmax.bf16 %v1792, 0
      %v1825 = vmax.bf16 %v1793, 0
      %v1826 = vmax.bf16 %v1794, 0
      %v1827 = vmax.bf16 %v1795, 0
      %v1828 = vmax.bf16 %v1796, 0
      %v1829 = vmax.bf16 %v1797, 0
      %v1830 = vld [vmem:[%s3] sm:$0xff]
      %v1831 = vld [vmem:[%s3 + $0x8] sm:$0xff]
      %v1832 = vld [vmem:[%s3 + $0x10] sm:$0xff]
      %v1833 = vld [vmem:[%s3 + $0x18] sm:$0xff]
      %v1834 = vld [vmem:[%s3 + $0x20] sm:$0xff]
      %v1835 = vld [vmem:[%s3 + $0x28] sm:$0xff]
      %v1836 = vld [vmem:[%s3 + $0x30] sm:$0xff]
      %v1837 = vld [vmem:[%s3 + $0x38] sm:$0xff]
      %1839 = vset.pattern.permute.xlu0 0
      %1840 = vperm.xlu0 %1839, %v382
      %v1841 = vpop.permute.xlu0 %1840
      %1844 = vset.pattern.permute.xlu0 0
      %1845 = vperm.xlu0 %1844, %v383
      %v1846 = vpop.permute.xlu0 %1845
      %1849 = vset.pattern.permute.xlu0 0
      %1850 = vperm.xlu0 %1849, %v384
      %v1851 = vpop.permute.xlu0 %1850
      %1854 = vset.pattern.permute.xlu0 0
      %1855 = vperm.xlu0 %1854, %v385
      %v1856 = vpop.permute.xlu0 %1855
      %1859 = vset.pattern.permute.xlu0 0
      %1860 = vperm.xlu0 %1859, %v386
      %v1861 = vpop.permute.xlu0 %1860
      %1864 = vset.pattern.permute.xlu0 0
      %1865 = vperm.xlu0 %1864, %v387
      %v1866 = vpop.permute.xlu0 %1865
      %1869 = vset.pattern.permute.xlu0 0
      %1870 = vperm.xlu0 %1869, %v388
      %v1871 = vpop.permute.xlu0 %1870
      %1874 = vset.pattern.permute.xlu0 0
      %1875 = vperm.xlu0 %1874, %v389
      %v1876 = vpop.permute.xlu0 %1875
      %v1886 = vunpack.c.l.b16 %v1830
      %v1887 = vunpack.c.h.b16 %v1830
      %v1888 = vunpack.c.l.b16 %v1831
      %v1889 = vunpack.c.h.b16 %v1831
      %v1890 = vunpack.c.l.b16 %v1832
      %v1891 = vunpack.c.h.b16 %v1832
      %v1892 = vunpack.c.l.b16 %v1833
      %v1893 = vunpack.c.h.b16 %v1833
      %v1894 = vunpack.c.l.b16 %v1834
      %v1895 = vunpack.c.h.b16 %v1834
      %v1896 = vunpack.c.l.b16 %v1835
      %v1897 = vunpack.c.h.b16 %v1835
      %v1898 = vunpack.c.l.b16 %v1836
      %v1899 = vunpack.c.h.b16 %v1836
      %v1900 = vunpack.c.l.b16 %v1837
      %v1901 = vunpack.c.h.b16 %v1837
      %v1902 = vpack.c.b16 %v1888, %v1886
      %v1903 = vpack.c.b16 %v1889, %v1887
      %v1904 = vpack.c.b16 %v1892, %v1890
      %v1905 = vpack.c.b16 %v1893, %v1891
      %v1906 = vpack.c.b16 %v1896, %v1894
      %v1907 = vpack.c.b16 %v1897, %v1895
      %v1908 = vpack.c.b16 %v1900, %v1898
      %v1909 = vpack.c.b16 %v1901, %v1899
      %v1950 = vunpack.c.l.b16 %v1798
      %v1951 = vunpack.c.h.b16 %v1798
      %v1952 = vunpack.c.l.b16 %v1799
      %v1953 = vunpack.c.h.b16 %v1799
      %v1954 = vunpack.c.l.b16 %v1800
      %v1955 = vunpack.c.h.b16 %v1800
      %v1956 = vunpack.c.l.b16 %v1801
      %v1957 = vunpack.c.h.b16 %v1801
      %v1958 = vunpack.c.l.b16 %v1802
      %v1959 = vunpack.c.h.b16 %v1802
      %v1960 = vunpack.c.l.b16 %v1803
      %v1961 = vunpack.c.h.b16 %v1803
      %v1962 = vunpack.c.l.b16 %v1804
      %v1963 = vunpack.c.h.b16 %v1804
      %v1964 = vunpack.c.l.b16 %v1805
      %v1965 = vunpack.c.h.b16 %v1805
      %v1966 = vunpack.c.l.b16 %v1806
      %v1967 = vunpack.c.h.b16 %v1806
      %v1968 = vunpack.c.l.b16 %v1807
      %v1969 = vunpack.c.h.b16 %v1807
      %v1970 = vunpack.c.l.b16 %v1808
      %v1971 = vunpack.c.h.b16 %v1808
      %v1972 = vunpack.c.l.b16 %v1809
      %v1973 = vunpack.c.h.b16 %v1809
      %v1974 = vunpack.c.l.b16 %v1810
      %v1975 = vunpack.c.h.b16 %v1810
      %v1976 = vunpack.c.l.b16 %v1811
      %v1977 = vunpack.c.h.b16 %v1811
      %v1978 = vunpack.c.l.b16 %v1812
      %v1979 = vunpack.c.h.b16 %v1812
      %v1980 = vunpack.c.l.b16 %v1813
      %v1981 = vunpack.c.h.b16 %v1813
      %v1982 = vunpack.c.l.b16 %v1814
      %v1983 = vunpack.c.h.b16 %v1814
      %v1984 = vunpack.c.l.b16 %v1815
      %v1985 = vunpack.c.h.b16 %v1815
      %v1986 = vunpack.c.l.b16 %v1816
      %v1987 = vunpack.c.h.b16 %v1816
      %v1988 = vunpack.c.l.b16 %v1817
      %v1989 = vunpack.c.h.b16 %v1817
      %v1990 = vunpack.c.l.b16 %v1818
      %v1991 = vunpack.c.h.b16 %v1818
      %v1992 = vunpack.c.l.b16 %v1819
      %v1993 = vunpack.c.h.b16 %v1819
      %v1994 = vunpack.c.l.b16 %v1820
      %v1995 = vunpack.c.h.b16 %v1820
      %v1996 = vunpack.c.l.b16 %v1821
      %v1997 = vunpack.c.h.b16 %v1821
      %v1998 = vunpack.c.l.b16 %v1822
      %v1999 = vunpack.c.h.b16 %v1822
      %v2000 = vunpack.c.l.b16 %v1823
      %v2001 = vunpack.c.h.b16 %v1823
      %v2002 = vunpack.c.l.b16 %v1824
      %v2003 = vunpack.c.h.b16 %v1824
      %v2004 = vunpack.c.l.b16 %v1825
      %v2005 = vunpack.c.h.b16 %v1825
      %v2006 = vunpack.c.l.b16 %v1826
      %v2007 = vunpack.c.h.b16 %v1826
      %v2008 = vunpack.c.l.b16 %v1827
      %v2009 = vunpack.c.h.b16 %v1827
      %v2010 = vunpack.c.l.b16 %v1828
      %v2011 = vunpack.c.h.b16 %v1828
      %v2012 = vunpack.c.l.b16 %v1829
      %v2013 = vunpack.c.h.b16 %v1829
      %v2014 = vpack.c.b16 %v1952, %v1950
      %v2015 = vpack.c.b16 %v1953, %v1951
      %v2016 = vpack.c.b16 %v1956, %v1954
      %v2017 = vpack.c.b16 %v1957, %v1955
      %v2018 = vpack.c.b16 %v1960, %v1958
      %v2019 = vpack.c.b16 %v1961, %v1959
      %v2020 = vpack.c.b16 %v1964, %v1962
      %v2021 = vpack.c.b16 %v1965, %v1963
      %v2022 = vpack.c.b16 %v1968, %v1966
      %v2023 = vpack.c.b16 %v1969, %v1967
      %v2024 = vpack.c.b16 %v1972, %v1970
      %v2025 = vpack.c.b16 %v1973, %v1971
      %v2026 = vpack.c.b16 %v1976, %v1974
      %v2027 = vpack.c.b16 %v1977, %v1975
      %v2028 = vpack.c.b16 %v1980, %v1978
      %v2029 = vpack.c.b16 %v1981, %v1979
      %v2030 = vpack.c.b16 %v1984, %v1982
      %v2031 = vpack.c.b16 %v1985, %v1983
      %v2032 = vpack.c.b16 %v1988, %v1986
      %v2033 = vpack.c.b16 %v1989, %v1987
      %v2034 = vpack.c.b16 %v1992, %v1990
      %v2035 = vpack.c.b16 %v1993, %v1991
      %v2036 = vpack.c.b16 %v1996, %v1994
      %v2037 = vpack.c.b16 %v1997, %v1995
      %v2038 = vpack.c.b16 %v2000, %v1998
      %v2039 = vpack.c.b16 %v2001, %v1999
      %v2040 = vpack.c.b16 %v2004, %v2002
      %v2041 = vpack.c.b16 %v2005, %v2003
      %v2042 = vpack.c.b16 %v2008, %v2006
      %v2043 = vpack.c.b16 %v2009, %v2007
      %v2044 = vpack.c.b16 %v2012, %v2010
      %v2045 = vpack.c.b16 %v2013, %v2011
      %2078 = vmatprep.subr.bf16.mxu0 %v2015
      %2079 = vmatpush1.bf16.msra.mxu0 %v2014
      %2080 = vmatprep.subr.bf16.mxu0 %v2017
      %2081 = vmatpush1.bf16.msra.mxu0 %v2016
      %2082 = vmatprep.subr.bf16.mxu0 %v2019
      %2083 = vmatpush1.bf16.msra.mxu0 %v2018
      %2084 = vmatprep.subr.bf16.mxu0 %v2021
      %2085 = vmatpush1.bf16.msra.mxu0 %v2020
      %2086 = vmatprep.subr.bf16.mxu0 %v2023
      %2087 = vmatpush1.bf16.msra.mxu0 %v2022
      %2088 = vmatprep.subr.bf16.mxu0 %v2025
      %2089 = vmatpush1.bf16.msra.mxu0 %v2024
      %2090 = vmatprep.subr.bf16.mxu0 %v2027
      %2091 = vmatpush1.bf16.msra.mxu0 %v2026
      %2092 = vmatprep.subr.bf16.mxu0 %v2029
      %2093 = vmatpush1.bf16.msra.mxu0 %v2028
      %2094 = vmatprep.subr.bf16.mxu0 %v2031
      %2095 = vmatpush1.bf16.msra.mxu0 %v2030
      %2096 = vmatprep.subr.bf16.mxu0 %v2033
      %2097 = vmatpush1.bf16.msra.mxu0 %v2032
      %2098 = vmatprep.subr.bf16.mxu0 %v2035
      %2099 = vmatpush1.bf16.msra.mxu0 %v2034
      %2100 = vmatprep.subr.bf16.mxu0 %v2037
      %2101 = vmatpush1.bf16.msra.mxu0 %v2036
      %2102 = vmatprep.subr.bf16.mxu0 %v2039
      %2103 = vmatpush1.bf16.msra.mxu0 %v2038
      %2104 = vmatprep.subr.bf16.mxu0 %v2041
      %2105 = vmatpush1.bf16.msra.mxu0 %v2040
      %2106 = vmatprep.subr.bf16.mxu0 %v2043
      %2107 = vmatpush1.bf16.msra.mxu0 %v2042
      %2108 = vmatprep.subr.bf16.mxu0 %v2045
      %2109 = vmatpush1.bf16.msra.mxu0 %v2044
      %2110 = vmatprep.mubr.bf16.mxu0 %v1903
      %2111 = vmatmul.mubr.bf16.gmra.mrb[0].mxu0 %v1902
      %v2112 = vpop.f32.mrb[0].mxu0
      %v2113 = vadd.f32 %v1841, %v2112
      %v2114 = vpop.f32.mrb[0].mxu0
      %v2115 = vadd.f32 %v1841, %v2114
      %v2116 = vpop.f32.mrb[0].mxu0
      %v2117 = vadd.f32 %v1846, %v2116
      %v2118 = vpop.f32.mrb[0].mxu0
      %v2119 = vadd.f32 %v1846, %v2118
      %2120 = vmatprep.mubr.bf16.mxu0 %v1905
      %2121 = vmatmul.mubr.bf16.gmra.mrb[0].mxu0 %v1904
      %v2122 = vpop.f32.mrb[0].mxu0
      %v2123 = vadd.f32 %v1851, %v2122
      %v2124 = vpop.f32.mrb[0].mxu0
      %v2125 = vadd.f32 %v1851, %v2124
      %v2126 = vpop.f32.mrb[0].mxu0
      %v2127 = vadd.f32 %v1856, %v2126
      %v2128 = vpop.f32.mrb[0].mxu0
      %v2129 = vadd.f32 %v1856, %v2128
      %2130 = vmatprep.mubr.bf16.mxu0 %v1907
      %2131 = vmatmul.mubr.bf16.gmra.mrb[0].mxu0 %v1906
      %v2132 = vpop.f32.mrb[0].mxu0
      %v2133 = vadd.f32 %v1861, %v2132
      %v2134 = vpop.f32.mrb[0].mxu0
      %v2135 = vadd.f32 %v1861, %v2134
      %v2136 = vpop.f32.mrb[0].mxu0
      %v2137 = vadd.f32 %v1866, %v2136
      %v2138 = vpop.f32.mrb[0].mxu0
      %v2139 = vadd.f32 %v1866, %v2138
      %2140 = vmatprep.mubr.bf16.mxu0 %v1909
      %2141 = vmatmul.mubr.bf16.gmra.mrb[0].mxu0 %v1908
      %v2142 = vpop.f32.mrb[0].mxu0
      %v2143 = vadd.f32 %v1871, %v2142
      %v2144 = vpop.f32.mrb[0].mxu0
      %v2145 = vadd.f32 %v1871, %v2144
      %v2146 = vpop.f32.mrb[0].mxu0
      %v2147 = vadd.f32 %v1876, %v2146
      %v2148 = vpop.f32.mrb[0].mxu0
      %v2149 = vadd.f32 %v1876, %v2148
      %2150 = vdwg.mxu0
      %v2151 = vmax.f32 %v2113, 0.0
      %v2152 = vmax.f32 %v2115, 0.0
      %v2153 = vmax.f32 %v2117, 0.0
      %v2154 = vmax.f32 %v2119, 0.0
      %v2155 = vmax.f32 %v2123, 0.0
      %v2156 = vmax.f32 %v2125, 0.0
      %v2157 = vmax.f32 %v2127, 0.0
      %v2158 = vmax.f32 %v2129, 0.0
      %v2159 = vmax.f32 %v2133, 0.0
      %v2160 = vmax.f32 %v2135, 0.0
      %v2161 = vmax.f32 %v2137, 0.0
      %v2162 = vmax.f32 %v2139, 0.0
      %v2163 = vmax.f32 %v2143, 0.0
      %v2164 = vmax.f32 %v2145, 0.0
      %v2165 = vmax.f32 %v2147, 0.0
      %v2166 = vmax.f32 %v2149, 0.0
      %v2167 = vld [vmem:[%s4] sm:$0xf]
      %v2168 = vld [vmem:[%s4 + $0x4] sm:$0xf]
      %v2169 = vld [vmem:[%s4 + $0x8] sm:$0xf]
      %v2170 = vld [vmem:[%s4 + $0xc] sm:$0xf]
      %v2171 = vld [vmem:[%s4 + $0x10] sm:$0xf]
      %v2172 = vld [vmem:[%s4 + $0x14] sm:$0xf]
      %v2173 = vld [vmem:[%s4 + $0x18] sm:$0xf]
      %v2174 = vld [vmem:[%s4 + $0x1c] sm:$0xf]
      %v2175 = vld [vmem:[%s4 + $0x20] sm:$0xf]
      %v2176 = vld [vmem:[%s4 + $0x24] sm:$0xf]
      %v2177 = vld [vmem:[%s4 + $0x28] sm:$0xf]
      %v2178 = vld [vmem:[%s4 + $0x2c] sm:$0xf]
      %v2179 = vld [vmem:[%s4 + $0x30] sm:$0xf]
      %v2180 = vld [vmem:[%s4 + $0x34] sm:$0xf]
      %v2181 = vld [vmem:[%s4 + $0x38] sm:$0xf]
      %v2182 = vld [vmem:[%s4 + $0x3c] sm:$0xf]
      %v2183 = vld [vmem:[%s4 + $0x40] sm:$0xf]
      %v2184 = vld [vmem:[%s4 + $0x44] sm:$0xf]
      %v2185 = vld [vmem:[%s4 + $0x48] sm:$0xf]
      %v2186 = vld [vmem:[%s4 + $0x4c] sm:$0xf]
      %v2187 = vld [vmem:[%s4 + $0x50] sm:$0xf]
      %v2188 = vld [vmem:[%s4 + $0x54] sm:$0xf]
      %v2189 = vld [vmem:[%s4 + $0x58] sm:$0xf]
      %v2190 = vld [vmem:[%s4 + $0x5c] sm:$0xf]
      %v2191 = vld [vmem:[%s4 + $0x60] sm:$0xf]
      %v2192 = vld [vmem:[%s4 + $0x64] sm:$0xf]
      %v2193 = vld [vmem:[%s4 + $0x68] sm:$0xf]
      %v2194 = vld [vmem:[%s4 + $0x6c] sm:$0xf]
      %v2195 = vld [vmem:[%s4 + $0x70] sm:$0xf]
      %v2196 = vld [vmem:[%s4 + $0x74] sm:$0xf]
      %v2197 = vld [vmem:[%s4 + $0x78] sm:$0xf]
      %v2198 = vld [vmem:[%s4 + $0x7c] sm:$0xf]
      %v2199 = vpack.c.bf16 %v2153, %v2151
      %v2200 = vpack.c.bf16 %v2154, %v2152
      %v2201 = vpack.c.bf16 %v2157, %v2155
      %v2202 = vpack.c.bf16 %v2158, %v2156
      %v2203 = vpack.c.bf16 %v2161, %v2159
      %v2204 = vpack.c.bf16 %v2162, %v2160
      %v2205 = vpack.c.bf16 %v2165, %v2163
      %v2206 = vpack.c.bf16 %v2166, %v2164
      %v2239 = vunpack.c.l.b16 %v2167
      %v2240 = vunpack.c.l.b16 %v2168
      %v2241 = vunpack.c.l.b16 %v2169
      %v2242 = vunpack.c.l.b16 %v2170
      %v2243 = vunpack.c.l.b16 %v2171
      %v2244 = vunpack.c.l.b16 %v2172
      %v2245 = vunpack.c.l.b16 %v2173
      %v2246 = vunpack.c.l.b16 %v2174
      %v2247 = vunpack.c.l.b16 %v2175
      %v2248 = vunpack.c.l.b16 %v2176
      %v2249 = vunpack.c.l.b16 %v2177
      %v2250 = vunpack.c.l.b16 %v2178
      %v2251 = vunpack.c.l.b16 %v2179
      %v2252 = vunpack.c.l.b16 %v2180
      %v2253 = vunpack.c.l.b16 %v2181
      %v2254 = vunpack.c.l.b16 %v2182
      %v2255 = vunpack.c.l.b16 %v2183
      %v2256 = vunpack.c.l.b16 %v2184
      %v2257 = vunpack.c.l.b16 %v2185
      %v2258 = vunpack.c.l.b16 %v2186
      %v2259 = vunpack.c.l.b16 %v2187
      %v2260 = vunpack.c.l.b16 %v2188
      %v2261 = vunpack.c.l.b16 %v2189
      %v2262 = vunpack.c.l.b16 %v2190
      %v2263 = vunpack.c.l.b16 %v2191
      %v2264 = vunpack.c.l.b16 %v2192
      %v2265 = vunpack.c.l.b16 %v2193
      %v2266 = vunpack.c.l.b16 %v2194
      %v2267 = vunpack.c.l.b16 %v2195
      %v2268 = vunpack.c.l.b16 %v2196
      %v2269 = vunpack.c.l.b16 %v2197
      %v2270 = vunpack.c.l.b16 %v2198
      %v2271 = vpack.c.b16 %v2240, %v2239
      %v2272 = vpack.c.b16 %v2242, %v2241
      %v2273 = vpack.c.b16 %v2244, %v2243
      %v2274 = vpack.c.b16 %v2246, %v2245
      %v2275 = vpack.c.b16 %v2248, %v2247
      %v2276 = vpack.c.b16 %v2250, %v2249
      %v2277 = vpack.c.b16 %v2252, %v2251
      %v2278 = vpack.c.b16 %v2254, %v2253
      %v2279 = vpack.c.b16 %v2256, %v2255
      %v2280 = vpack.c.b16 %v2258, %v2257
      %v2281 = vpack.c.b16 %v2260, %v2259
      %v2282 = vpack.c.b16 %v2262, %v2261
      %v2283 = vpack.c.b16 %v2264, %v2263
      %v2284 = vpack.c.b16 %v2266, %v2265
      %v2285 = vpack.c.b16 %v2268, %v2267
      %v2286 = vpack.c.b16 %v2270, %v2269
      %vm2287 = vcmask 523264
      %v2289 = vsel %vm2287, %v2271, 0
      %v2292 = vsel %vm2287, %v2272, 0
      %v2295 = vsel %vm2287, %v2273, 0
      %v2298 = vsel %vm2287, %v2274, 0
      %v2301 = vsel %vm2287, %v2275, 0
      %v2304 = vsel %vm2287, %v2276, 0
      %v2307 = vsel %vm2287, %v2277, 0
      %v2310 = vsel %vm2287, %v2278, 0
      %v2313 = vsel %vm2287, %v2279, 0
      %v2316 = vsel %vm2287, %v2280, 0
      %v2319 = vsel %vm2287, %v2281, 0
      %v2322 = vsel %vm2287, %v2282, 0
      %v2325 = vsel %vm2287, %v2283, 0
      %v2328 = vsel %vm2287, %v2284, 0
      %v2331 = vsel %vm2287, %v2285, 0
      %v2334 = vsel %vm2287, %v2286, 0
      %2336 = vmatprep.subr.bf16.mxu0 %v2200
      %2337 = vmatpush1.bf16.msra.mxu0 %v2199
      %2338 = vmatprep.subr.bf16.mxu0 %v2202
      %2339 = vmatpush1.bf16.msra.mxu0 %v2201
      %2340 = vmatprep.subr.bf16.mxu0 %v2204
      %2341 = vmatpush1.bf16.msra.mxu0 %v2203
      %2342 = vmatprep.subr.bf16.mxu0 %v2206
      %2343 = vmatpush1.bf16.msra.mxu0 %v2205
      %2344 = vmatprep.subr.bf16.mxu0 0
      %2345 = vmatpush1.bf16.msra.mxu0 0
      %2346 = vmatprep.subr.bf16.mxu0 0
      %2347 = vmatpush1.bf16.msra.mxu0 0
      %2348 = vmatprep.subr.bf16.mxu0 0
      %2349 = vmatpush1.bf16.msra.mxu0 0
      %2350 = vmatprep.subr.bf16.mxu0 0
      %2351 = vmatpush1.bf16.msra.mxu0 0
      %2352 = vmatprep.subr.bf16.mxu0 0
      %2353 = vmatpush1.bf16.msra.mxu0 0
      %2354 = vmatprep.subr.bf16.mxu0 0
      %2355 = vmatpush1.bf16.msra.mxu0 0
      %2356 = vmatprep.subr.bf16.mxu0 0
      %2357 = vmatpush1.bf16.msra.mxu0 0
      %2358 = vmatprep.subr.bf16.mxu0 0
      %2359 = vmatpush1.bf16.msra.mxu0 0
      %2360 = vmatprep.subr.bf16.mxu0 0
      %2361 = vmatpush1.bf16.msra.mxu0 0
      %2362 = vmatprep.subr.bf16.mxu0 0
      %2363 = vmatpush1.bf16.msra.mxu0 0
      %2364 = vmatprep.subr.bf16.mxu0 0
      %2365 = vmatpush1.bf16.msra.mxu0 0
      %2366 = vmatprep.subr.bf16.mxu0 0
      %2367 = vmatpush1.bf16.msra.mxu0 0
      %2368 = vmatprep.mubr.bf16.mxu0 0
      %2369 = vmatmul.mubr.bf16.gmra.mrb[0].mxu0 %v2289
      %v2370 = vpop.f32.mrb[0].mxu0
      %v2371 = vadd.f32 0.0, %v2370
      %v2372 = vpop.f32.mrb[0].mxu0
      %v2373 = vadd.f32 0.0, %v2372
      %v2374 = vpop.f32.mrb[0].mxu0
      %v2375 = vadd.f32 0.0, %v2374
      %v2376 = vpop.f32.mrb[0].mxu0
      %v2377 = vadd.f32 0.0, %v2376
      %2378 = vmatprep.mubr.bf16.mxu0 0
      %2379 = vmatmul.mubr.bf16.gmra.mrb[0].mxu0 %v2292
      %v2380 = vpop.f32.mrb[0].mxu0
      %v2381 = vadd.f32 0.0, %v2380
      %v2382 = vpop.f32.mrb[0].mxu0
      %v2383 = vadd.f32 0.0, %v2382
      %v2384 = vpop.f32.mrb[0].mxu0
      %v2385 = vadd.f32 0.0, %v2384
      %v2386 = vpop.f32.mrb[0].mxu0
      %v2387 = vadd.f32 0.0, %v2386
      %2388 = vmatprep.mubr.bf16.mxu0 0
      %2389 = vmatmul.mubr.bf16.gmra.mrb[0].mxu0 %v2295
      %v2390 = vpop.f32.mrb[0].mxu0
      %v2391 = vadd.f32 0.0, %v2390
      %v2392 = vpop.f32.mrb[0].mxu0
      %v2393 = vadd.f32 0.0, %v2392
      %v2394 = vpop.f32.mrb[0].mxu0
      %v2395 = vadd.f32 0.0, %v2394
      %v2396 = vpop.f32.mrb[0].mxu0
      %v2397 = vadd.f32 0.0, %v2396
      %2398 = vmatprep.mubr.bf16.mxu0 0
      %2399 = vmatmul.mubr.bf16.gmra.mrb[0].mxu0 %v2298
      %v2400 = vpop.f32.mrb[0].mxu0
      %v2401 = vadd.f32 0.0, %v2400
      %v2402 = vpop.f32.mrb[0].mxu0
      %v2403 = vadd.f32 0.0, %v2402
      %v2404 = vpop.f32.mrb[0].mxu0
      %v2405 = vadd.f32 0.0, %v2404
      %v2406 = vpop.f32.mrb[0].mxu0
      %v2407 = vadd.f32 0.0, %v2406
      %2408 = vmatprep.mubr.bf16.mxu0 0
      %2409 = vmatmul.mubr.bf16.gmra.mrb[0].mxu0 %v2301
      %v2410 = vpop.f32.mrb[0].mxu0
      %v2411 = vadd.f32 0.0, %v2410
      %v2412 = vpop.f32.mrb[0].mxu0
      %v2413 = vadd.f32 0.0, %v2412
      %v2414 = vpop.f32.mrb[0].mxu0
      %v2415 = vadd.f32 0.0, %v2414
      %v2416 = vpop.f32.mrb[0].mxu0
      %v2417 = vadd.f32 0.0, %v2416
      %2418 = vmatprep.mubr.bf16.mxu0 0
      %2419 = vmatmul.mubr.bf16.gmra.mrb[0].mxu0 %v2304
      %v2420 = vpop.f32.mrb[0].mxu0
      %v2421 = vadd.f32 0.0, %v2420
      %v2422 = vpop.f32.mrb[0].mxu0
      %v2423 = vadd.f32 0.0, %v2422
      %v2424 = vpop.f32.mrb[0].mxu0
      %v2425 = vadd.f32 0.0, %v2424
      %v2426 = vpop.f32.mrb[0].mxu0
      %v2427 = vadd.f32 0.0, %v2426
      %2428 = vmatprep.mubr.bf16.mxu0 0
      %2429 = vmatmul.mubr.bf16.gmra.mrb[0].mxu0 %v2307
      %v2430 = vpop.f32.mrb[0].mxu0
      %v2431 = vadd.f32 0.0, %v2430
      %v2432 = vpop.f32.mrb[0].mxu0
      %v2433 = vadd.f32 0.0, %v2432
      %v2434 = vpop.f32.mrb[0].mxu0
      %v2435 = vadd.f32 0.0, %v2434
      %v2436 = vpop.f32.mrb[0].mxu0
      %v2437 = vadd.f32 0.0, %v2436
      %2438 = vmatprep.mubr.bf16.mxu0 0
      %2439 = vmatmul.mubr.bf16.gmra.mrb[0].mxu0 %v2310
      %v2440 = vpop.f32.mrb[0].mxu0
      %v2441 = vadd.f32 0.0, %v2440
      %v2442 = vpop.f32.mrb[0].mxu0
      %v2443 = vadd.f32 0.0, %v2442
      %v2444 = vpop.f32.mrb[0].mxu0
      %v2445 = vadd.f32 0.0, %v2444
      %v2446 = vpop.f32.mrb[0].mxu0
      %v2447 = vadd.f32 0.0, %v2446
      %2448 = vmatprep.mubr.bf16.mxu0 0
      %2449 = vmatmul.mubr.bf16.gmra.mrb[0].mxu0 %v2313
      %v2450 = vpop.f32.mrb[0].mxu0
      %v2451 = vadd.f32 0.0, %v2450
      %v2452 = vpop.f32.mrb[0].mxu0
      %v2453 = vadd.f32 0.0, %v2452
      %v2454 = vpop.f32.mrb[0].mxu0
      %v2455 = vadd.f32 0.0, %v2454
      %v2456 = vpop.f32.mrb[0].mxu0
      %v2457 = vadd.f32 0.0, %v2456
      %2458 = vmatprep.mubr.bf16.mxu0 0
      %2459 = vmatmul.mubr.bf16.gmra.mrb[0].mxu0 %v2316
      %v2460 = vpop.f32.mrb[0].mxu0
      %v2461 = vadd.f32 0.0, %v2460
      %v2462 = vpop.f32.mrb[0].mxu0
      %v2463 = vadd.f32 0.0, %v2462
      %v2464 = vpop.f32.mrb[0].mxu0
      %v2465 = vadd.f32 0.0, %v2464
      %v2466 = vpop.f32.mrb[0].mxu0
      %v2467 = vadd.f32 0.0, %v2466
      %2468 = vmatprep.mubr.bf16.mxu0 0
      %2469 = vmatmul.mubr.bf16.gmra.mrb[0].mxu0 %v2319
      %v2470 = vpop.f32.mrb[0].mxu0
      %v2471 = vadd.f32 0.0, %v2470
      %v2472 = vpop.f32.mrb[0].mxu0
      %v2473 = vadd.f32 0.0, %v2472
      %v2474 = vpop.f32.mrb[0].mxu0
      %v2475 = vadd.f32 0.0, %v2474
      %v2476 = vpop.f32.mrb[0].mxu0
      %v2477 = vadd.f32 0.0, %v2476
      %2478 = vmatprep.mubr.bf16.mxu0 0
      %2479 = vmatmul.mubr.bf16.gmra.mrb[0].mxu0 %v2322
      %v2480 = vpop.f32.mrb[0].mxu0
      %v2481 = vadd.f32 0.0, %v2480
      %v2482 = vpop.f32.mrb[0].mxu0
      %v2483 = vadd.f32 0.0, %v2482
      %v2484 = vpop.f32.mrb[0].mxu0
      %v2485 = vadd.f32 0.0, %v2484
      %v2486 = vpop.f32.mrb[0].mxu0
      %v2487 = vadd.f32 0.0, %v2486
      %2488 = vmatprep.mubr.bf16.mxu0 0
      %2489 = vmatmul.mubr.bf16.gmra.mrb[0].mxu0 %v2325
      %v2490 = vpop.f32.mrb[0].mxu0
      %v2491 = vadd.f32 0.0, %v2490
      %v2492 = vpop.f32.mrb[0].mxu0
      %v2493 = vadd.f32 0.0, %v2492
      %v2494 = vpop.f32.mrb[0].mxu0
      %v2495 = vadd.f32 0.0, %v2494
      %v2496 = vpop.f32.mrb[0].mxu0
      %v2497 = vadd.f32 0.0, %v2496
      %2498 = vmatprep.mubr.bf16.mxu0 0
      %2499 = vmatmul.mubr.bf16.gmra.mrb[0].mxu0 %v2328
      %v2500 = vpop.f32.mrb[0].mxu0
      %v2501 = vadd.f32 0.0, %v2500
      %v2502 = vpop.f32.mrb[0].mxu0
      %v2503 = vadd.f32 0.0, %v2502
      %v2504 = vpop.f32.mrb[0].mxu0
      %v2505 = vadd.f32 0.0, %v2504
      %v2506 = vpop.f32.mrb[0].mxu0
      %v2507 = vadd.f32 0.0, %v2506
      %2508 = vmatprep.mubr.bf16.mxu0 0
      %2509 = vmatmul.mubr.bf16.gmra.mrb[0].mxu0 %v2331
      %v2510 = vpop.f32.mrb[0].mxu0
      %v2511 = vadd.f32 0.0, %v2510
      %v2512 = vpop.f32.mrb[0].mxu0
      %v2513 = vadd.f32 0.0, %v2512
      %v2514 = vpop.f32.mrb[0].mxu0
      %v2515 = vadd.f32 0.0, %v2514
      %v2516 = vpop.f32.mrb[0].mxu0
      %v2517 = vadd.f32 0.0, %v2516
      %2518 = vmatprep.mubr.bf16.mxu0 0
      %2519 = vmatmul.mubr.bf16.gmra.mrb[0].mxu0 %v2334
      %v2520 = vpop.f32.mrb[0].mxu0
      %v2521 = vadd.f32 0.0, %v2520
      %v2522 = vpop.f32.mrb[0].mxu0
      %v2523 = vadd.f32 0.0, %v2522
      %v2524 = vpop.f32.mrb[0].mxu0
      %v2525 = vadd.f32 0.0, %v2524
      %v2526 = vpop.f32.mrb[0].mxu0
      %v2527 = vadd.f32 0.0, %v2526
      %2528 = vdwg.mxu0
      %v2529 = vpack.c.bf16 %v2375, %v2371
      %v2530 = vpack.c.bf16 %v2377, %v2373
      %v2531 = vpack.c.bf16 %v2385, %v2381
      %v2532 = vpack.c.bf16 %v2387, %v2383
      %v2533 = vpack.c.bf16 %v2395, %v2391
      %v2534 = vpack.c.bf16 %v2397, %v2393
      %v2535 = vpack.c.bf16 %v2405, %v2401
      %v2536 = vpack.c.bf16 %v2407, %v2403
      %v2537 = vpack.c.bf16 %v2415, %v2411
      %v2538 = vpack.c.bf16 %v2417, %v2413
      %v2539 = vpack.c.bf16 %v2425, %v2421
      %v2540 = vpack.c.bf16 %v2427, %v2423
      %v2541 = vpack.c.bf16 %v2435, %v2431
      %v2542 = vpack.c.bf16 %v2437, %v2433
      %v2543 = vpack.c.bf16 %v2445, %v2441
      %v2544 = vpack.c.bf16 %v2447, %v2443
      %v2545 = vpack.c.bf16 %v2455, %v2451
      %v2546 = vpack.c.bf16 %v2457, %v2453
      %v2547 = vpack.c.bf16 %v2465, %v2461
      %v2548 = vpack.c.bf16 %v2467, %v2463
      %v2549 = vpack.c.bf16 %v2475, %v2471
      %v2550 = vpack.c.bf16 %v2477, %v2473
      %v2551 = vpack.c.bf16 %v2485, %v2481
      %v2552 = vpack.c.bf16 %v2487, %v2483
      %v2553 = vpack.c.bf16 %v2495, %v2491
      %v2554 = vpack.c.bf16 %v2497, %v2493
      %v2555 = vpack.c.bf16 %v2505, %v2501
      %v2556 = vpack.c.bf16 %v2507, %v2503
      %v2557 = vpack.c.bf16 %v2515, %v2511
      %v2558 = vpack.c.bf16 %v2517, %v2513
      %v2559 = vpack.c.bf16 %v2525, %v2521
      %v2560 = vpack.c.bf16 %v2527, %v2523
      %2561 = vset.pattern.permute.xlu0 1
      %2562 = vperm.xlu0 %2561, %v349
      %v2563 = vpop.permute.xlu0 %2562
      %v2566 = vunpack.c.l.s4 839922192
      %v2567 = vunpack.c.0.s8 %v2566
      %v2568 = vlaneseq
      %v2569 = vshrl.u32 %v2568, 7
      %v2570 = vsub.s32 %v2567, %v2569
      %v2571 = vrot.slane %v2563, %v2570
      %2572 = vset.pattern.permute.xlu0 1
      %2573 = vperm.xlu0 %2572, %v350
      %v2574 = vpop.permute.xlu0 %2573
      %v2577 = vunpack.c.l.s4 839922192
      %v2578 = vunpack.c.0.s8 %v2577
      %v2579 = vlaneseq
      %v2580 = vshrl.u32 %v2579, 7
      %v2581 = vsub.s32 %v2578, %v2580
      %v2582 = vrot.slane %v2574, %v2581
      %2583 = vset.pattern.permute.xlu0 1
      %2584 = vperm.xlu0 %2583, %v351
      %v2585 = vpop.permute.xlu0 %2584
      %v2588 = vunpack.c.l.s4 839922192
      %v2589 = vunpack.c.0.s8 %v2588
      %v2590 = vlaneseq
      %v2591 = vshrl.u32 %v2590, 7
      %v2592 = vsub.s32 %v2589, %v2591
      %v2593 = vrot.slane %v2585, %v2592
      %2594 = vset.pattern.permute.xlu0 1
      %2595 = vperm.xlu0 %2594, %v352
      %v2596 = vpop.permute.xlu0 %2595
      %v2599 = vunpack.c.l.s4 839922192
      %v2600 = vunpack.c.0.s8 %v2599
      %v2601 = vlaneseq
      %v2602 = vshrl.u32 %v2601, 7
      %v2603 = vsub.s32 %v2600, %v2602
      %v2604 = vrot.slane %v2596, %v2603
      %2605 = vset.pattern.permute.xlu0 1
      %2606 = vperm.xlu0 %2605, %v353
      %v2607 = vpop.permute.xlu0 %2606
      %v2610 = vunpack.c.l.s4 839922192
      %v2611 = vunpack.c.0.s8 %v2610
      %v2612 = vlaneseq
      %v2613 = vshrl.u32 %v2612, 7
      %v2614 = vsub.s32 %v2611, %v2613
      %v2615 = vrot.slane %v2607, %v2614
      %2616 = vset.pattern.permute.xlu0 1
      %2617 = vperm.xlu0 %2616, %v354
      %v2618 = vpop.permute.xlu0 %2617
      %v2621 = vunpack.c.l.s4 839922192
      %v2622 = vunpack.c.0.s8 %v2621
      %v2623 = vlaneseq
      %v2624 = vshrl.u32 %v2623, 7
      %v2625 = vsub.s32 %v2622, %v2624
      %v2626 = vrot.slane %v2618, %v2625
      %2627 = vset.pattern.permute.xlu0 1
      %2628 = vperm.xlu0 %2627, %v355
      %v2629 = vpop.permute.xlu0 %2628
      %v2632 = vunpack.c.l.s4 839922192
      %v2633 = vunpack.c.0.s8 %v2632
      %v2634 = vlaneseq
      %v2635 = vshrl.u32 %v2634, 7
      %v2636 = vsub.s32 %v2633, %v2635
      %v2637 = vrot.slane %v2629, %v2636
      %2638 = vset.pattern.permute.xlu0 1
      %2639 = vperm.xlu0 %2638, %v356
      %v2640 = vpop.permute.xlu0 %2639
      %v2643 = vunpack.c.l.s4 839922192
      %v2644 = vunpack.c.0.s8 %v2643
      %v2645 = vlaneseq
      %v2646 = vshrl.u32 %v2645, 7
      %v2647 = vsub.s32 %v2644, %v2646
      %v2648 = vrot.slane %v2640, %v2647
      %2649 = vset.pattern.permute.xlu0 1
      %2650 = vperm.xlu0 %2649, %v357
      %v2651 = vpop.permute.xlu0 %2650
      %v2654 = vunpack.c.l.s4 839922192
      %v2655 = vunpack.c.0.s8 %v2654
      %v2656 = vlaneseq
      %v2657 = vshrl.u32 %v2656, 7
      %v2658 = vsub.s32 %v2655, %v2657
      %v2659 = vrot.slane %v2651, %v2658
      %2660 = vset.pattern.permute.xlu0 1
      %2661 = vperm.xlu0 %2660, %v358
      %v2662 = vpop.permute.xlu0 %2661
      %v2665 = vunpack.c.l.s4 839922192
      %v2666 = vunpack.c.0.s8 %v2665
      %v2667 = vlaneseq
      %v2668 = vshrl.u32 %v2667, 7
      %v2669 = vsub.s32 %v2666, %v2668
      %v2670 = vrot.slane %v2662, %v2669
      %2671 = vset.pattern.permute.xlu0 1
      %2672 = vperm.xlu0 %2671, %v359
      %v2673 = vpop.permute.xlu0 %2672
      %v2676 = vunpack.c.l.s4 839922192
      %v2677 = vunpack.c.0.s8 %v2676
      %v2678 = vlaneseq
      %v2679 = vshrl.u32 %v2678, 7
      %v2680 = vsub.s32 %v2677, %v2679
      %v2681 = vrot.slane %v2673, %v2680
      %2682 = vset.pattern.permute.xlu0 1
      %2683 = vperm.xlu0 %2682, %v360
      %v2684 = vpop.permute.xlu0 %2683
      %v2687 = vunpack.c.l.s4 839922192
      %v2688 = vunpack.c.0.s8 %v2687
      %v2689 = vlaneseq
      %v2690 = vshrl.u32 %v2689, 7
      %v2691 = vsub.s32 %v2688, %v2690
      %v2692 = vrot.slane %v2684, %v2691
      %2693 = vset.pattern.permute.xlu0 1
      %2694 = vperm.xlu0 %2693, %v361
      %v2695 = vpop.permute.xlu0 %2694
      %v2698 = vunpack.c.l.s4 839922192
      %v2699 = vunpack.c.0.s8 %v2698
      %v2700 = vlaneseq
      %v2701 = vshrl.u32 %v2700, 7
      %v2702 = vsub.s32 %v2699, %v2701
      %v2703 = vrot.slane %v2695, %v2702
      %2704 = vset.pattern.permute.xlu0 1
      %2705 = vperm.xlu0 %2704, %v362
      %v2706 = vpop.permute.xlu0 %2705
      %v2709 = vunpack.c.l.s4 839922192
      %v2710 = vunpack.c.0.s8 %v2709
      %v2711 = vlaneseq
      %v2712 = vshrl.u32 %v2711, 7
      %v2713 = vsub.s32 %v2710, %v2712
      %v2714 = vrot.slane %v2706, %v2713
      %2715 = vset.pattern.permute.xlu0 1
      %2716 = vperm.xlu0 %2715, %v363
      %v2717 = vpop.permute.xlu0 %2716
      %v2720 = vunpack.c.l.s4 839922192
      %v2721 = vunpack.c.0.s8 %v2720
      %v2722 = vlaneseq
      %v2723 = vshrl.u32 %v2722, 7
      %v2724 = vsub.s32 %v2721, %v2723
      %v2725 = vrot.slane %v2717, %v2724
      %2726 = vset.pattern.permute.xlu0 1
      %2727 = vperm.xlu0 %2726, %v364
      %v2728 = vpop.permute.xlu0 %2727
      %v2731 = vunpack.c.l.s4 839922192
      %v2732 = vunpack.c.0.s8 %v2731
      %v2733 = vlaneseq
      %v2734 = vshrl.u32 %v2733, 7
      %v2735 = vsub.s32 %v2732, %v2734
      %v2736 = vrot.slane %v2728, %v2735
      %2737 = vset.pattern.permute.xlu0 1
      %2738 = vperm.xlu0 %2737, %v365
      %v2739 = vpop.permute.xlu0 %2738
      %v2742 = vunpack.c.l.s4 839922192
      %v2743 = vunpack.c.0.s8 %v2742
      %v2744 = vlaneseq
      %v2745 = vshrl.u32 %v2744, 7
      %v2746 = vsub.s32 %v2743, %v2745
      %v2747 = vrot.slane %v2739, %v2746
      %2748 = vset.pattern.permute.xlu0 1
      %2749 = vperm.xlu0 %2748, %v366
      %v2750 = vpop.permute.xlu0 %2749
      %v2753 = vunpack.c.l.s4 839922192
      %v2754 = vunpack.c.0.s8 %v2753
      %v2755 = vlaneseq
      %v2756 = vshrl.u32 %v2755, 7
      %v2757 = vsub.s32 %v2754, %v2756
      %v2758 = vrot.slane %v2750, %v2757
      %2759 = vset.pattern.permute.xlu0 1
      %2760 = vperm.xlu0 %2759, %v367
      %v2761 = vpop.permute.xlu0 %2760
      %v2764 = vunpack.c.l.s4 839922192
      %v2765 = vunpack.c.0.s8 %v2764
      %v2766 = vlaneseq
      %v2767 = vshrl.u32 %v2766, 7
      %v2768 = vsub.s32 %v2765, %v2767
      %v2769 = vrot.slane %v2761, %v2768
      %2770 = vset.pattern.permute.xlu0 1
      %2771 = vperm.xlu0 %2770, %v368
      %v2772 = vpop.permute.xlu0 %2771
      %v2775 = vunpack.c.l.s4 839922192
      %v2776 = vunpack.c.0.s8 %v2775
      %v2777 = vlaneseq
      %v2778 = vshrl.u32 %v2777, 7
      %v2779 = vsub.s32 %v2776, %v2778
      %v2780 = vrot.slane %v2772, %v2779
      %2781 = vset.pattern.permute.xlu0 1
      %2782 = vperm.xlu0 %2781, %v369
      %v2783 = vpop.permute.xlu0 %2782
      %v2786 = vunpack.c.l.s4 839922192
      %v2787 = vunpack.c.0.s8 %v2786
      %v2788 = vlaneseq
      %v2789 = vshrl.u32 %v2788, 7
      %v2790 = vsub.s32 %v2787, %v2789
      %v2791 = vrot.slane %v2783, %v2790
      %2792 = vset.pattern.permute.xlu0 1
      %2793 = vperm.xlu0 %2792, %v370
      %v2794 = vpop.permute.xlu0 %2793
      %v2797 = vunpack.c.l.s4 839922192
      %v2798 = vunpack.c.0.s8 %v2797
      %v2799 = vlaneseq
      %v2800 = vshrl.u32 %v2799, 7
      %v2801 = vsub.s32 %v2798, %v2800
      %v2802 = vrot.slane %v2794, %v2801
      %2803 = vset.pattern.permute.xlu0 1
      %2804 = vperm.xlu0 %2803, %v371
      %v2805 = vpop.permute.xlu0 %2804
      %v2808 = vunpack.c.l.s4 839922192
      %v2809 = vunpack.c.0.s8 %v2808
      %v2810 = vlaneseq
      %v2811 = vshrl.u32 %v2810, 7
      %v2812 = vsub.s32 %v2809, %v2811
      %v2813 = vrot.slane %v2805, %v2812
      %2814 = vset.pattern.permute.xlu0 1
      %2815 = vperm.xlu0 %2814, %v372
      %v2816 = vpop.permute.xlu0 %2815
      %v2819 = vunpack.c.l.s4 839922192
      %v2820 = vunpack.c.0.s8 %v2819
      %v2821 = vlaneseq
      %v2822 = vshrl.u32 %v2821, 7
      %v2823 = vsub.s32 %v2820, %v2822
      %v2824 = vrot.slane %v2816, %v2823
      %2825 = vset.pattern.permute.xlu0 1
      %2826 = vperm.xlu0 %2825, %v373
      %v2827 = vpop.permute.xlu0 %2826
      %v2830 = vunpack.c.l.s4 839922192
      %v2831 = vunpack.c.0.s8 %v2830
      %v2832 = vlaneseq
      %v2833 = vshrl.u32 %v2832, 7
      %v2834 = vsub.s32 %v2831, %v2833
      %v2835 = vrot.slane %v2827, %v2834
      %2836 = vset.pattern.permute.xlu0 1
      %2837 = vperm.xlu0 %2836, %v374
      %v2838 = vpop.permute.xlu0 %2837
      %v2841 = vunpack.c.l.s4 839922192
      %v2842 = vunpack.c.0.s8 %v2841
      %v2843 = vlaneseq
      %v2844 = vshrl.u32 %v2843, 7
      %v2845 = vsub.s32 %v2842, %v2844
      %v2846 = vrot.slane %v2838, %v2845
      %2847 = vset.pattern.permute.xlu0 1
      %2848 = vperm.xlu0 %2847, %v375
      %v2849 = vpop.permute.xlu0 %2848
      %v2852 = vunpack.c.l.s4 839922192
      %v2853 = vunpack.c.0.s8 %v2852
      %v2854 = vlaneseq
      %v2855 = vshrl.u32 %v2854, 7
      %v2856 = vsub.s32 %v2853, %v2855
      %v2857 = vrot.slane %v2849, %v2856
      %2858 = vset.pattern.permute.xlu0 1
      %2859 = vperm.xlu0 %2858, %v376
      %v2860 = vpop.permute.xlu0 %2859
      %v2863 = vunpack.c.l.s4 839922192
      %v2864 = vunpack.c.0.s8 %v2863
      %v2865 = vlaneseq
      %v2866 = vshrl.u32 %v2865, 7
      %v2867 = vsub.s32 %v2864, %v2866
      %v2868 = vrot.slane %v2860, %v2867
      %2869 = vset.pattern.permute.xlu0 1
      %2870 = vperm.xlu0 %2869, %v377
      %v2871 = vpop.permute.xlu0 %2870
      %v2874 = vunpack.c.l.s4 839922192
      %v2875 = vunpack.c.0.s8 %v2874
      %v2876 = vlaneseq
      %v2877 = vshrl.u32 %v2876, 7
      %v2878 = vsub.s32 %v2875, %v2877
      %v2879 = vrot.slane %v2871, %v2878
      %2880 = vset.pattern.permute.xlu0 1
      %2881 = vperm.xlu0 %2880, %v378
      %v2882 = vpop.permute.xlu0 %2881
      %v2885 = vunpack.c.l.s4 839922192
      %v2886 = vunpack.c.0.s8 %v2885
      %v2887 = vlaneseq
      %v2888 = vshrl.u32 %v2887, 7
      %v2889 = vsub.s32 %v2886, %v2888
      %v2890 = vrot.slane %v2882, %v2889
      %2891 = vset.pattern.permute.xlu0 1
      %2892 = vperm.xlu0 %2891, %v379
      %v2893 = vpop.permute.xlu0 %2892
      %v2896 = vunpack.c.l.s4 839922192
      %v2897 = vunpack.c.0.s8 %v2896
      %v2898 = vlaneseq
      %v2899 = vshrl.u32 %v2898, 7
      %v2900 = vsub.s32 %v2897, %v2899
      %v2901 = vrot.slane %v2893, %v2900
      %2902 = vset.pattern.permute.xlu0 1
      %2903 = vperm.xlu0 %2902, %v380
      %v2904 = vpop.permute.xlu0 %2903
      %v2907 = vunpack.c.l.s4 839922192
      %v2908 = vunpack.c.0.s8 %v2907
      %v2909 = vlaneseq
      %v2910 = vshrl.u32 %v2909, 7
      %v2911 = vsub.s32 %v2908, %v2910
      %v2912 = vrot.slane %v2904, %v2911
      %v2945 = vunpack.c.l.b16 %v2529
      %v2946 = vunpack.c.l.b16 %v2530
      %v2947 = vunpack.c.h.b16 %v2529
      %v2948 = vunpack.c.h.b16 %v2530
      %v2949 = vunpack.c.l.b16 %v2531
      %v2950 = vunpack.c.l.b16 %v2532
      %v2951 = vunpack.c.h.b16 %v2531
      %v2952 = vunpack.c.h.b16 %v2532
      %v2953 = vunpack.c.l.b16 %v2533
      %v2954 = vunpack.c.l.b16 %v2534
      %v2955 = vunpack.c.h.b16 %v2533
      %v2956 = vunpack.c.h.b16 %v2534
      %v2957 = vunpack.c.l.b16 %v2535
      %v2958 = vunpack.c.l.b16 %v2536
      %v2959 = vunpack.c.h.b16 %v2535
      %v2960 = vunpack.c.h.b16 %v2536
      %v2961 = vunpack.c.l.b16 %v2537
      %v2962 = vunpack.c.l.b16 %v2538
      %v2963 = vunpack.c.h.b16 %v2537
      %v2964 = vunpack.c.h.b16 %v2538
      %v2965 = vunpack.c.l.b16 %v2539
      %v2966 = vunpack.c.l.b16 %v2540
      %v2967 = vunpack.c.h.b16 %v2539
      %v2968 = vunpack.c.h.b16 %v2540
      %v2969 = vunpack.c.l.b16 %v2541
      %v2970 = vunpack.c.l.b16 %v2542
      %v2971 = vunpack.c.h.b16 %v2541
      %v2972 = vunpack.c.h.b16 %v2542
      %v2973 = vunpack.c.l.b16 %v2543
      %v2974 = vunpack.c.l.b16 %v2544
      %v2975 = vunpack.c.h.b16 %v2543
      %v2976 = vunpack.c.h.b16 %v2544
      %v2977 = vunpack.c.l.b16 %v2545
      %v2978 = vunpack.c.l.b16 %v2546
      %v2979 = vunpack.c.h.b16 %v2545
      %v2980 = vunpack.c.h.b16 %v2546
      %v2981 = vunpack.c.l.b16 %v2547
      %v2982 = vunpack.c.l.b16 %v2548
      %v2983 = vunpack.c.h.b16 %v2547
      %v2984 = vunpack.c.h.b16 %v2548
      %v2985 = vunpack.c.l.b16 %v2549
      %v2986 = vunpack.c.l.b16 %v2550
      %v2987 = vunpack.c.h.b16 %v2549
      %v2988 = vunpack.c.h.b16 %v2550
      %v2989 = vunpack.c.l.b16 %v2551
      %v2990 = vunpack.c.l.b16 %v2552
      %v2991 = vunpack.c.h.b16 %v2551
      %v2992 = vunpack.c.h.b16 %v2552
      %v2993 = vunpack.c.l.b16 %v2553
      %v2994 = vunpack.c.l.b16 %v2554
      %v2995 = vunpack.c.h.b16 %v2553
      %v2996 = vunpack.c.h.b16 %v2554
      %v2997 = vunpack.c.l.b16 %v2555
      %v2998 = vunpack.c.l.b16 %v2556
      %v2999 = vunpack.c.h.b16 %v2555
      %v3000 = vunpack.c.h.b16 %v2556
      %v3001 = vunpack.c.l.b16 %v2557
      %v3002 = vunpack.c.l.b16 %v2558
      %v3003 = vunpack.c.h.b16 %v2557
      %v3004 = vunpack.c.h.b16 %v2558
      %v3005 = vunpack.c.l.b16 %v2559
      %v3006 = vunpack.c.l.b16 %v2560
      %v3007 = vunpack.c.h.b16 %v2559
      %v3008 = vunpack.c.h.b16 %v2560
      %v3009 = vpack.c.b16 %v2946, %v2945
      %v3010 = vpack.c.b16 %v2948, %v2947
      %v3011 = vpack.c.b16 %v2950, %v2949
      %v3012 = vpack.c.b16 %v2952, %v2951
      %v3013 = vpack.c.b16 %v2954, %v2953
      %v3014 = vpack.c.b16 %v2956, %v2955
      %v3015 = vpack.c.b16 %v2958, %v2957
      %v3016 = vpack.c.b16 %v2960, %v2959
      %v3017 = vpack.c.b16 %v2962, %v2961
      %v3018 = vpack.c.b16 %v2964, %v2963
      %v3019 = vpack.c.b16 %v2966, %v2965
      %v3020 = vpack.c.b16 %v2968, %v2967
      %v3021 = vpack.c.b16 %v2970, %v2969
      %v3022 = vpack.c.b16 %v2972, %v2971
      %v3023 = vpack.c.b16 %v2974, %v2973
      %v3024 = vpack.c.b16 %v2976, %v2975
      %v3025 = vpack.c.b16 %v2978, %v2977
      %v3026 = vpack.c.b16 %v2980, %v2979
      %v3027 = vpack.c.b16 %v2982, %v2981
      %v3028 = vpack.c.b16 %v2984, %v2983
      %v3029 = vpack.c.b16 %v2986, %v2985
      %v3030 = vpack.c.b16 %v2988, %v2987
      %v3031 = vpack.c.b16 %v2990, %v2989
      %v3032 = vpack.c.b16 %v2992, %v2991
      %v3033 = vpack.c.b16 %v2994, %v2993
      %v3034 = vpack.c.b16 %v2996, %v2995
      %v3035 = vpack.c.b16 %v2998, %v2997
      %v3036 = vpack.c.b16 %v3000, %v2999
      %v3037 = vpack.c.b16 %v3002, %v3001
      %v3038 = vpack.c.b16 %v3004, %v3003
      %v3039 = vpack.c.b16 %v3006, %v3005
      %v3040 = vpack.c.b16 %v3008, %v3007
      %v3073 = vadd.bf16 %v2571, %v3009
      %v3074 = vadd.bf16 %v2582, %v3010
      %v3075 = vadd.bf16 %v2593, %v3011
      %v3076 = vadd.bf16 %v2604, %v3012
      %v3077 = vadd.bf16 %v2615, %v3013
      %v3078 = vadd.bf16 %v2626, %v3014
      %v3079 = vadd.bf16 %v2637, %v3015
      %v3080 = vadd.bf16 %v2648, %v3016
      %v3081 = vadd.bf16 %v2659, %v3017
      %v3082 = vadd.bf16 %v2670, %v3018
      %v3083 = vadd.bf16 %v2681, %v3019
      %v3084 = vadd.bf16 %v2692, %v3020
      %v3085 = vadd.bf16 %v2703, %v3021
      %v3086 = vadd.bf16 %v2714, %v3022
      %v3087 = vadd.bf16 %v2725, %v3023
      %v3088 = vadd.bf16 %v2736, %v3024
      %v3089 = vadd.bf16 %v2747, %v3025
      %v3090 = vadd.bf16 %v2758, %v3026
      %v3091 = vadd.bf16 %v2769, %v3027
      %v3092 = vadd.bf16 %v2780, %v3028
      %v3093 = vadd.bf16 %v2791, %v3029
      %v3094 = vadd.bf16 %v2802, %v3030
      %v3095 = vadd.bf16 %v2813, %v3031
      %v3096 = vadd.bf16 %v2824, %v3032
      %v3097 = vadd.bf16 %v2835, %v3033
      %v3098 = vadd.bf16 %v2846, %v3034
      %v3099 = vadd.bf16 %v2857, %v3035
      %v3100 = vadd.bf16 %v2868, %v3036
      %v3101 = vadd.bf16 %v2879, %v3037
      %v3102 = vadd.bf16 %v2890, %v3038
      %v3103 = vadd.bf16 %v2901, %v3039
      %v3104 = vadd.bf16 %v2912, %v3040
      %v3105 = vmax.bf16 %v3073, 0
      %v3106 = vmax.bf16 %v3074, 0
      %v3107 = vmax.bf16 %v3075, 0
      %v3108 = vmax.bf16 %v3076, 0
      %v3109 = vmax.bf16 %v3077, 0
      %v3110 = vmax.bf16 %v3078, 0
      %v3111 = vmax.bf16 %v3079, 0
      %v3112 = vmax.bf16 %v3080, 0
      %v3113 = vmax.bf16 %v3081, 0
      %v3114 = vmax.bf16 %v3082, 0
      %v3115 = vmax.bf16 %v3083, 0
      %v3116 = vmax.bf16 %v3084, 0
      %v3117 = vmax.bf16 %v3085, 0
      %v3118 = vmax.bf16 %v3086, 0
      %v3119 = vmax.bf16 %v3087, 0
      %v3120 = vmax.bf16 %v3088, 0
      %v3121 = vmax.bf16 %v3089, 0
      %v3122 = vmax.bf16 %v3090, 0
      %v3123 = vmax.bf16 %v3091, 0
      %v3124 = vmax.bf16 %v3092, 0
      %v3125 = vmax.bf16 %v3093, 0
      %v3126 = vmax.bf16 %v3094, 0
      %v3127 = vmax.bf16 %v3095, 0
      %v3128 = vmax.bf16 %v3096, 0
      %v3129 = vmax.bf16 %v3097, 0
      %v3130 = vmax.bf16 %v3098, 0
      %v3131 = vmax.bf16 %v3099, 0
      %v3132 = vmax.bf16 %v3100, 0
      %v3133 = vmax.bf16 %v3101, 0
      %v3134 = vmax.bf16 %v3102, 0
      %v3135 = vmax.bf16 %v3103, 0
      %v3136 = vmax.bf16 %v3104, 0
      %v3137 = vld [vmem:[%s5] sm:$0xff]
      %v3138 = vld [vmem:[%s5 + $0x8] sm:$0xff]
      %v3139 = vld [vmem:[%s5 + $0x10] sm:$0xff]
      %v3140 = vld [vmem:[%s5 + $0x18] sm:$0xff]
      %v3141 = vld [vmem:[%s5 + $0x20] sm:$0xff]
      %v3142 = vld [vmem:[%s5 + $0x28] sm:$0xff]
      %v3143 = vld [vmem:[%s5 + $0x30] sm:$0xff]
      %v3144 = vld [vmem:[%s5 + $0x38] sm:$0xff]
      %3145 = vset.pattern.permute.xlu0 1
      %3146 = vperm.xlu0 %3145, %v382
      %v3147 = vpop.permute.xlu0 %3146
      %3149 = vset.pattern.permute.xlu0 1
      %3150 = vperm.xlu0 %3149, %v383
      %v3151 = vpop.permute.xlu0 %3150
      %3153 = vset.pattern.permute.xlu0 1
      %3154 = vperm.xlu0 %3153, %v384
      %v3155 = vpop.permute.xlu0 %3154
      %3157 = vset.pattern.permute.xlu0 1
      %3158 = vperm.xlu0 %3157, %v385
      %v3159 = vpop.permute.xlu0 %3158
      %3161 = vset.pattern.permute.xlu0 1
      %3162 = vperm.xlu0 %3161, %v386
      %v3163 = vpop.permute.xlu0 %3162
      %3165 = vset.pattern.permute.xlu0 1
      %3166 = vperm.xlu0 %3165, %v387
      %v3167 = vpop.permute.xlu0 %3166
      %3169 = vset.pattern.permute.xlu0 1
      %3170 = vperm.xlu0 %3169, %v388
      %v3171 = vpop.permute.xlu0 %3170
      %3173 = vset.pattern.permute.xlu0 1
      %3174 = vperm.xlu0 %3173, %v389
      %v3175 = vpop.permute.xlu0 %3174
      %v3185 = vunpack.c.l.b16 %v3137
      %v3186 = vunpack.c.h.b16 %v3137
      %v3187 = vunpack.c.l.b16 %v3138
      %v3188 = vunpack.c.h.b16 %v3138
      %v3189 = vunpack.c.l.b16 %v3139
      %v3190 = vunpack.c.h.b16 %v3139
      %v3191 = vunpack.c.l.b16 %v3140
      %v3192 = vunpack.c.h.b16 %v3140
      %v3193 = vunpack.c.l.b16 %v3141
      %v3194 = vunpack.c.h.b16 %v3141
      %v3195 = vunpack.c.l.b16 %v3142
      %v3196 = vunpack.c.h.b16 %v3142
      %v3197 = vunpack.c.l.b16 %v3143
      %v3198 = vunpack.c.h.b16 %v3143
      %v3199 = vunpack.c.l.b16 %v3144
      %v3200 = vunpack.c.h.b16 %v3144
      %v3201 = vpack.c.b16 %v3187, %v3185
      %v3202 = vpack.c.b16 %v3188, %v3186
      %v3203 = vpack.c.b16 %v3191, %v3189
      %v3204 = vpack.c.b16 %v3192, %v3190
      %v3205 = vpack.c.b16 %v3195, %v3193
      %v3206 = vpack.c.b16 %v3196, %v3194
      %v3207 = vpack.c.b16 %v3199, %v3197
      %v3208 = vpack.c.b16 %v3200, %v3198
      %v3249 = vunpack.c.l.b16 %v3105
      %v3250 = vunpack.c.h.b16 %v3105
      %v3251 = vunpack.c.l.b16 %v3106
      %v3252 = vunpack.c.h.b16 %v3106
      %v3253 = vunpack.c.l.b16 %v3107
      %v3254 = vunpack.c.h.b16 %v3107
      %v3255 = vunpack.c.l.b16 %v3108
      %v3256 = vunpack.c.h.b16 %v3108
      %v3257 = vunpack.c.l.b16 %v3109
      %v3258 = vunpack.c.h.b16 %v3109
      %v3259 = vunpack.c.l.b16 %v3110
      %v3260 = vunpack.c.h.b16 %v3110
      %v3261 = vunpack.c.l.b16 %v3111
      %v3262 = vunpack.c.h.b16 %v3111
      %v3263 = vunpack.c.l.b16 %v3112
      %v3264 = vunpack.c.h.b16 %v3112
      %v3265 = vunpack.c.l.b16 %v3113
      %v3266 = vunpack.c.h.b16 %v3113
      %v3267 = vunpack.c.l.b16 %v3114
      %v3268 = vunpack.c.h.b16 %v3114
      %v3269 = vunpack.c.l.b16 %v3115
      %v3270 = vunpack.c.h.b16 %v3115
      %v3271 = vunpack.c.l.b16 %v3116
      %v3272 = vunpack.c.h.b16 %v3116
      %v3273 = vunpack.c.l.b16 %v3117
      %v3274 = vunpack.c.h.b16 %v3117
      %v3275 = vunpack.c.l.b16 %v3118
      %v3276 = vunpack.c.h.b16 %v3118
      %v3277 = vunpack.c.l.b16 %v3119
      %v3278 = vunpack.c.h.b16 %v3119
      %v3279 = vunpack.c.l.b16 %v3120
      %v3280 = vunpack.c.h.b16 %v3120
      %v3281 = vunpack.c.l.b16 %v3121
      %v3282 = vunpack.c.h.b16 %v3121
      %v3283 = vunpack.c.l.b16 %v3122
      %v3284 = vunpack.c.h.b16 %v3122
      %v3285 = vunpack.c.l.b16 %v3123
      %v3286 = vunpack.c.h.b16 %v3123
      %v3287 = vunpack.c.l.b16 %v3124
      %v3288 = vunpack.c.h.b16 %v3124
      %v3289 = vunpack.c.l.b16 %v3125
      %v3290 = vunpack.c.h.b16 %v3125
      %v3291 = vunpack.c.l.b16 %v3126
      %v3292 = vunpack.c.h.b16 %v3126
      %v3293 = vunpack.c.l.b16 %v3127
      %v3294 = vunpack.c.h.b16 %v3127
      %v3295 = vunpack.c.l.b16 %v3128
      %v3296 = vunpack.c.h.b16 %v3128
      %v3297 = vunpack.c.l.b16 %v3129
      %v3298 = vunpack.c.h.b16 %v3129
      %v3299 = vunpack.c.l.b16 %v3130
      %v3300 = vunpack.c.h.b16 %v3130
      %v3301 = vunpack.c.l.b16 %v3131
      %v3302 = vunpack.c.h.b16 %v3131
      %v3303 = vunpack.c.l.b16 %v3132
      %v3304 = vunpack.c.h.b16 %v3132
      %v3305 = vunpack.c.l.b16 %v3133
      %v3306 = vunpack.c.h.b16 %v3133
      %v3307 = vunpack.c.l.b16 %v3134
      %v3308 = vunpack.c.h.b16 %v3134
      %v3309 = vunpack.c.l.b16 %v3135
      %v3310 = vunpack.c.h.b16 %v3135
      %v3311 = vunpack.c.l.b16 %v3136
      %v3312 = vunpack.c.h.b16 %v3136
      %v3313 = vpack.c.b16 %v3251, %v3249
      %v3314 = vpack.c.b16 %v3252, %v3250
      %v3315 = vpack.c.b16 %v3255, %v3253
      %v3316 = vpack.c.b16 %v3256, %v3254
      %v3317 = vpack.c.b16 %v3259, %v3257
      %v3318 = vpack.c.b16 %v3260, %v3258
      %v3319 = vpack.c.b16 %v3263, %v3261
      %v3320 = vpack.c.b16 %v3264, %v3262
      %v3321 = vpack.c.b16 %v3267, %v3265
      %v3322 = vpack.c.b16 %v3268, %v3266
      %v3323 = vpack.c.b16 %v3271, %v3269
      %v3324 = vpack.c.b16 %v3272, %v3270
      %v3325 = vpack.c.b16 %v3275, %v3273
      %v3326 = vpack.c.b16 %v3276, %v3274
      %v3327 = vpack.c.b16 %v3279, %v3277
      %v3328 = vpack.c.b16 %v3280, %v3278
      %v3329 = vpack.c.b16 %v3283, %v3281
      %v3330 = vpack.c.b16 %v3284, %v3282
      %v3331 = vpack.c.b16 %v3287, %v3285
      %v3332 = vpack.c.b16 %v3288, %v3286
      %v3333 = vpack.c.b16 %v3291, %v3289
      %v3334 = vpack.c.b16 %v3292, %v3290
      %v3335 = vpack.c.b16 %v3295, %v3293
      %v3336 = vpack.c.b16 %v3296, %v3294
      %v3337 = vpack.c.b16 %v3299, %v3297
      %v3338 = vpack.c.b16 %v3300, %v3298
      %v3339 = vpack.c.b16 %v3303, %v3301
      %v3340 = vpack.c.b16 %v3304, %v3302
      %v3341 = vpack.c.b16 %v3307, %v3305
      %v3342 = vpack.c.b16 %v3308, %v3306
      %v3343 = vpack.c.b16 %v3311, %v3309
      %v3344 = vpack.c.b16 %v3312, %v3310
      %3377 = vmatprep.subr.bf16.mxu0 %v3314
      %3378 = vmatpush1.bf16.msra.mxu0 %v3313
      %3379 = vmatprep.subr.bf16.mxu0 %v3316
      %3380 = vmatpush1.bf16.msra.mxu0 %v3315
      %3381 = vmatprep.subr.bf16.mxu0 %v3318
      %3382 = vmatpush1.bf16.msra.mxu0 %v3317
      %3383 = vmatprep.subr.bf16.mxu0 %v3320
      %3384 = vmatpush1.bf16.msra.mxu0 %v3319
      %3385 = vmatprep.subr.bf16.mxu0 %v3322
      %3386 = vmatpush1.bf16.msra.mxu0 %v3321
      %3387 = vmatprep.subr.bf16.mxu0 %v3324
      %3388 = vmatpush1.bf16.msra.mxu0 %v3323
      %3389 = vmatprep.subr.bf16.mxu0 %v3326
      %3390 = vmatpush1.bf16.msra.mxu0 %v3325
      %3391 = vmatprep.subr.bf16.mxu0 %v3328
      %3392 = vmatpush1.bf16.msra.mxu0 %v3327
      %3393 = vmatprep.subr.bf16.mxu0 %v3330
      %3394 = vmatpush1.bf16.msra.mxu0 %v3329
      %3395 = vmatprep.subr.bf16.mxu0 %v3332
      %3396 = vmatpush1.bf16.msra.mxu0 %v3331
      %3397 = vmatprep.subr.bf16.mxu0 %v3334
      %3398 = vmatpush1.bf16.msra.mxu0 %v3333
      %3399 = vmatprep.subr.bf16.mxu0 %v3336
      %3400 = vmatpush1.bf16.msra.mxu0 %v3335
      %3401 = vmatprep.subr.bf16.mxu0 %v3338
      %3402 = vmatpush1.bf16.msra.mxu0 %v3337
      %3403 = vmatprep.subr.bf16.mxu0 %v3340
      %3404 = vmatpush1.bf16.msra.mxu0 %v3339
      %3405 = vmatprep.subr.bf16.mxu0 %v3342
      %3406 = vmatpush1.bf16.msra.mxu0 %v3341
      %3407 = vmatprep.subr.bf16.mxu0 %v3344
      %3408 = vmatpush1.bf16.msra.mxu0 %v3343
      %3409 = vmatprep.mubr.bf16.mxu0 %v3202
      %3410 = vmatmul.mubr.bf16.gmra.mrb[0].mxu0 %v3201
      %v3411 = vpop.f32.mrb[0].mxu0
      %v3412 = vadd.f32 %v3147, %v3411
      %v3413 = vpop.f32.mrb[0].mxu0
      %v3414 = vadd.f32 %v3147, %v3413
      %v3415 = vpop.f32.mrb[0].mxu0
      %v3416 = vadd.f32 %v3151, %v3415
      %v3417 = vpop.f32.mrb[0].mxu0
      %v3418 = vadd.f32 %v3151, %v3417
      %3419 = vmatprep.mubr.bf16.mxu0 %v3204
      %3420 = vmatmul.mubr.bf16.gmra.mrb[0].mxu0 %v3203
      %v3421 = vpop.f32.mrb[0].mxu0
      %v3422 = vadd.f32 %v3155, %v3421
      %v3423 = vpop.f32.mrb[0].mxu0
      %v3424 = vadd.f32 %v3155, %v3423
      %v3425 = vpop.f32.mrb[0].mxu0
      %v3426 = vadd.f32 %v3159, %v3425
      %v3427 = vpop.f32.mrb[0].mxu0
      %v3428 = vadd.f32 %v3159, %v3427
      %3429 = vmatprep.mubr.bf16.mxu0 %v3206
      %3430 = vmatmul.mubr.bf16.gmra.mrb[0].mxu0 %v3205
      %v3431 = vpop.f32.mrb[0].mxu0
      %v3432 = vadd.f32 %v3163, %v3431
      %v3433 = vpop.f32.mrb[0].mxu0
      %v3434 = vadd.f32 %v3163, %v3433
      %v3435 = vpop.f32.mrb[0].mxu0
      %v3436 = vadd.f32 %v3167, %v3435
      %v3437 = vpop.f32.mrb[0].mxu0
      %v3438 = vadd.f32 %v3167, %v3437
      %3439 = vmatprep.mubr.bf16.mxu0 %v3208
      %3440 = vmatmul.mubr.bf16.gmra.mrb[0].mxu0 %v3207
      %v3441 = vpop.f32.mrb[0].mxu0
      %v3442 = vadd.f32 %v3171, %v3441
      %v3443 = vpop.f32.mrb[0].mxu0
      %v3444 = vadd.f32 %v3171, %v3443
      %v3445 = vpop.f32.mrb[0].mxu0
      %v3446 = vadd.f32 %v3175, %v3445
      %v3447 = vpop.f32.mrb[0].mxu0
      %v3448 = vadd.f32 %v3175, %v3447
      %3449 = vdwg.mxu0
      %v3450 = vmax.f32 %v3412, 0.0
      %v3451 = vmax.f32 %v3414, 0.0
      %v3452 = vmax.f32 %v3416, 0.0
      %v3453 = vmax.f32 %v3418, 0.0
      %v3454 = vmax.f32 %v3422, 0.0
      %v3455 = vmax.f32 %v3424, 0.0
      %v3456 = vmax.f32 %v3426, 0.0
      %v3457 = vmax.f32 %v3428, 0.0
      %v3458 = vmax.f32 %v3432, 0.0
      %v3459 = vmax.f32 %v3434, 0.0
      %v3460 = vmax.f32 %v3436, 0.0
      %v3461 = vmax.f32 %v3438, 0.0
      %v3462 = vmax.f32 %v3442, 0.0
      %v3463 = vmax.f32 %v3444, 0.0
      %v3464 = vmax.f32 %v3446, 0.0
      %v3465 = vmax.f32 %v3448, 0.0
      %v3466 = vld [vmem:[%s6] sm:$0x3]
      %v3467 = vpack.c.bf16 %v3452, %v3450
      %v3468 = vpack.c.bf16 %v3453, %v3451
      %v3469 = vpack.c.bf16 %v3456, %v3454
      %v3470 = vpack.c.bf16 %v3457, %v3455
      %v3471 = vpack.c.bf16 %v3460, %v3458
      %v3472 = vpack.c.bf16 %v3461, %v3459
      %v3473 = vpack.c.bf16 %v3464, %v3462
      %v3474 = vpack.c.bf16 %v3465, %v3463
      %3476 = vset.pattern.permute.xlu0 2
      %3477 = vperm.xlu0 %3476, %v390
      %v3478 = vpop.permute.xlu0 %3477
      %v3481 = vsel %vm2287, %v3466, 0
      %3483 = vmatprep.subr.bf16.mxu0 %v3468
      %3484 = vmatpush1.bf16.msra.mxu0 %v3467
      %3485 = vmatprep.subr.bf16.mxu0 %v3470
      %3486 = vmatpush1.bf16.msra.mxu0 %v3469
      %3487 = vmatprep.subr.bf16.mxu0 %v3472
      %3488 = vmatpush1.bf16.msra.mxu0 %v3471
      %3489 = vmatprep.subr.bf16.mxu0 %v3474
      %3490 = vmatpush1.bf16.msra.mxu0 %v3473
      %3491 = vmatprep.subr.bf16.mxu0 0
      %3492 = vmatpush1.bf16.msra.mxu0 0
      %3493 = vmatprep.subr.bf16.mxu0 0
      %3494 = vmatpush1.bf16.msra.mxu0 0
      %3495 = vmatprep.subr.bf16.mxu0 0
      %3496 = vmatpush1.bf16.msra.mxu0 0
      %3497 = vmatprep.subr.bf16.mxu0 0
      %3498 = vmatpush1.bf16.msra.mxu0 0
      %3499 = vmatprep.subr.bf16.mxu0 0
      %3500 = vmatpush1.bf16.msra.mxu0 0
      %3501 = vmatprep.subr.bf16.mxu0 0
      %3502 = vmatpush1.bf16.msra.mxu0 0
      %3503 = vmatprep.subr.bf16.mxu0 0
      %3504 = vmatpush1.bf16.msra.mxu0 0
      %3505 = vmatprep.subr.bf16.mxu0 0
      %3506 = vmatpush1.bf16.msra.mxu0 0
      %3507 = vmatprep.subr.bf16.mxu0 0
      %3508 = vmatpush1.bf16.msra.mxu0 0
      %3509 = vmatprep.subr.bf16.mxu0 0
      %3510 = vmatpush1.bf16.msra.mxu0 0
      %3511 = vmatprep.subr.bf16.mxu0 0
      %3512 = vmatpush1.bf16.msra.mxu0 0
      %3513 = vmatprep.subr.bf16.mxu0 0
      %3514 = vmatpush1.bf16.msra.mxu0 0
      %3515 = vmatprep.mubr.bf16.mxu0 0
      %3516 = vmatmul.mubr.bf16.gmra.mrb[0].mxu0 %v3481
      %v3517 = vpop.f32.mrb[0].mxu0
      %v3518 = vadd.f32 %v3478, %v3517
      %v3519 = vpop.f32.mrb[0].mxu0
      %v3520 = vadd.f32 %v3478, %v3519
      %v3521 = vpop.f32.mrb[0].mxu0
      %v3522 = vpop.f32.mrb[0].mxu0
      %3523 = vdwg.mxu0
      %v3526 = vcombine.low %v3518, %v3520
      %3528 = vst [vmem:[%s346] sm:$0x77] %v3526
      %s3529 = smul.u32 2, %s24
      %p3530 = scmp.lt.s32.totalorder %s23, 1
      %s3531 = scalar_select %p3530, %s23, 1
      %p3532 = scmp.lt.s32.totalorder %s3529, 1
      %s3533 = scalar_select %p3532, %s3529, 1
      %s3534 = smul.addr %s3531, 2
      %s3535 = sadd.s32 %s3533, %s3534
      %s3536 = smul.addr %s3535, 4
      %s3537 = scalar_lea.vmem %s8, %s3536
      // Predicated region
      $region53: #{folding_decoder.1} parent=51 // pred_check
        %p3538 = pneg %p229
      $region54: #{folding_decoder.1} parent=51 // pred_check_branch
        %3540 = sbr.rel (%p3538) target = $region56
      $region55: #{folding_decoder.1} parent=51 // pred_region
        %s3541 = smul.u32 2, %s24
      $region56: #{folding_decoder.1} parent=51 // pred_fallthru
        _
    $region52: #{folding_decoder.1} parent=5 // pred_fallthru
      _
    %p3542 = scmp.le.s32.totalorder 2, %s14
    // Predicated region
    $region57: #{folding_decoder.1} parent=5 // pred_check
      %p3543 = pneg %p3542
    $region58: #{folding_decoder.1} parent=5 // pred_check_branch
      %3545 = sbr.rel (%p3543) target = $region60
    $region59: #{folding_decoder.1} parent=5 // pred_region
      %s3546 = ssub.s32 %s14, 2
      // Predicated region
      $region61: #{folding_decoder.1} parent=59 // pred_check
        %p3547 = pneg %p235
      $region62: #{folding_decoder.1} parent=59 // pred_check_branch
        %3549 = sbr.rel (%p3547) target = $region64
      $region63: #{folding_decoder.1} parent=59 // pred_region
        %s3550 = smul.u32 2, %s26
        %p3551 = scmp.lt.s32.totalorder %s25, 1
        %s3552 = scalar_select %p3551, %s25, 1
        %p3553 = scmp.lt.s32.totalorder %s3550, 1
        %s3554 = scalar_select %p3553, %s3550, 1
        %s3555 = smul.addr %s3552, 2
        %s3556 = sadd.s32 %s3554, %s3555
        %s3557 = smul.addr %s3556, 4
        %s3558 = scalar_lea.vmem %s8, %s3557
      $region64: #{folding_decoder.1} parent=59 // pred_fallthru
        _
    $region60: #{folding_decoder.1} parent=5 // pred_fallthru
      _
  $region6: #{folding_decoder.1} parent=0 // loop_footer
    %s18 = sadd.s32 1, %s14
  $region7: #{folding_decoder.1} parent=0 // loop_footer_branch
    %13 = sbr.rel target = $region3
  $region8: #{folding_decoder.1} parent=0 // loop_exit
    _

</llo_original>
